<compile_context>
chip_gen: v7x
topology: tpu7x:2x2x1
jax: 0.10.0
libtpu: 0.0.40
codegen_flags: <defaults>
</compile_context>

<pallas_src>
import functools

import jax
import jax.numpy as jnp
from jax.experimental import pallas as pl
from jax.experimental.pallas import tpu as pltpu

FUSION_MODALITY = "fusion"  # stands in for config.fusion_modality


def _round_up(v, m):
    return (v + m - 1) // m * m


# ----------------------------------------------------------------------------
# Fused Pallas kernel: conv3x3(Cin->C1)+ReLU -> conv3x3(C1->C2)+sigmoid.
#
# Layout: channels on sublanes, zero-padded spatial positions of the whole
# batch flattened on lanes (N*Hp*Wp, rounded up to a multiple of 128).  A 3x3
# tap (kh, kw) is then a static lane shift of kh*Wp + kw, so im2col is nine
# VMEM slice copies and each conv layer is a single MXU matmul with K = 9*C.
# ----------------------------------------------------------------------------
def _fused_backbone_kernel(x_ref, w1_ref, b1_ref, w2_ref, b2_ref, mask_ref,
                           o_ref, p1_ref, h1_ref, p2_ref, *, cin, c1, wp, fc):
    # ---- layer-1 im2col: stack 9 lane-shifted views of x along sublanes ----
    for kh in range(3):
        for kw in range(3):
            k = kh * 3 + kw
            s = kh * wp + kw
            p1_ref[k * cin:(k + 1) * cin, :] = (
                x_ref[:, s:s + fc].astype(p1_ref.dtype))

    # ---- layer 1: one bf16 matmul (K = 9*Cin), f32 accumulation ----
    h1 = jnp.dot(w1_ref[...], p1_ref[...], preferred_element_type=jnp.float32)
    h1 = jnp.maximum(h1 + b1_ref[...], 0.0)          # bias + ReLU in f32
    # Zero positions corresponding to padding seams / tail lanes so the
    # second conv sees true zero-padding (and no cross-image bleed).
    h1 = h1 * mask_ref[...]

    # ---- re-pad hidden activation inside VMEM (offset Wp+1 == pad by 1) ----
    off = wp + 1
    h1_ref[...] = jnp.zeros(h1_ref.shape, h1_ref.dtype)
    h1_ref[:, off:off + fc] = h1

    # ---- layer-2 im2col from the padded hidden activation ----
    for kh in range(3):
        for kw in range(3):
            k = kh * 3 + kw
            s = kh * wp + kw
            p2_ref[k * c1:(k + 1) * c1, :] = (
                h1_ref[:, s:s + fc].astype(p2_ref.dtype))

    # ---- layer 2: one bf16 matmul (K = 9*C1) + bias + sigmoid ----
    out = jnp.dot(w2_ref[...], p2_ref[...], preferred_element_type=jnp.float32)
    o_ref[...] = jax.nn.sigmoid(out + b2_ref[...])    # lane-dense full store


def fused_conv_backbone(params, x_nchw):
    """Two fused 3x3 convs (stride 1, pad 1) as one Pallas call. NCHW in/out."""
    n, cin, h, w = x_nchw.shape
    c1 = params["w1"].shape[0]
    c2 = params["w2"].shape[0]
    hp, wp = h + 2, w + 2
    flat = n * hp * wp                       # valid flat (batch*padded-HW) positions
    fc = _round_up(flat, 128)                # lane-dense compute width
    max_shift = 2 * wp + 2                   # largest 3x3 tap lane shift
    xl = _round_up(fc + max_shift, 128)      # padded input / hidden buffer width
    c2p = _round_up(c2, 8)                   # sublane-dense output channels

    # Zero-pad spatially and fold batch into the flattened lane dim.
    # (No 9x im2col tensor is ever materialised in HBM.)
    xpad = jnp.pad(x_nchw, ((0, 0), (0, 0), (1, 1), (1, 1)))
    xflat = jnp.transpose(xpad, (1, 0, 2, 3)).reshape(cin, flat)
    xflat = jnp.pad(xflat, ((0, 0), (0, xl - flat))).astype(jnp.float32)

    # Conv weights as (Cout, 9*Cin) matrices; K index = (kh*3 + kw)*Cin + c.
    w1m = jnp.transpose(params["w1"], (0, 2, 3, 1)).reshape(c1, 9 * cin)
    w1m = w1m.astype(jnp.bfloat16)
    w2m = jnp.transpose(params["w2"], (0, 2, 3, 1)).reshape(c2, 9 * c1)
    w2m = jnp.pad(w2m, ((0, c2p - c2), (0, 0))).astype(jnp.bfloat16)
    b1 = params["b1"].reshape(c1, 1).astype(jnp.float32)
    b2 = jnp.pad(params["b2"], (0, c2p - c2)).reshape(c2p, 1).astype(jnp.float32)

    # 1 at real image-interior positions, 0 at padding seams / tail lanes.
    q = jnp.arange(fc, dtype=jnp.int32)
    pin = q % (hp * wp)
    mask = ((q < flat) & (pin % wp < w) & (pin // wp < h))
    mask = mask.astype(jnp.float32).reshape(1, fc)

    kernel = functools.partial(_fused_backbone_kernel,
                               cin=cin, c1=c1, wp=wp, fc=fc)
    out = pl.pallas_call(
        kernel,
        out_shape=jax.ShapeDtypeStruct((c2p, fc), jnp.float32),
        # Everything fits easily in VMEM at this size; batch is folded into the
        # lane dim, so a single grid step avoids per-step overhead.  For much
        # larger H*W, add a parallel lane-tile grid axis (keeps v7x's 2 TCs busy
        # and bounds VMEM).
        grid=(1,),
        in_specs=[
            pl.BlockSpec((cin, xl), lambda i: (0, 0)),
            pl.BlockSpec((c1, 9 * cin), lambda i: (0, 0)),
            pl.BlockSpec((c1, 1), lambda i: (0, 0)),
            pl.BlockSpec((c2p, 9 * c1), lambda i: (0, 0)),
            pl.BlockSpec((c2p, 1), lambda i: (0, 0)),
            pl.BlockSpec((1, fc), lambda i: (0, 0)),
        ],
        out_specs=pl.BlockSpec((c2p, fc), lambda i: (0, 0)),
        scratch_shapes=[
            pltpu.VMEM((9 * cin, fc), jnp.bfloat16),  # layer-1 im2col patches
            pltpu.VMEM((c1, xl), jnp.float32),        # re-padded hidden activation
            pltpu.VMEM((9 * c1, fc), jnp.bfloat16),   # layer-2 im2col patches
        ],
        compiler_params=pltpu.CompilerParams(
            dimension_semantics=("arbitrary",)),
    )(xflat, w1m, b1, w2m, b2, mask)

    # Un-flatten: (C2, N*Hp*Wp) -> (N, C2, H, W)  (layout plumbing only).
    seg = out[:c2, :flat].reshape(c2, n, hp, wp)[:, :, :h, :w]
    return jnp.transpose(seg, (1, 0, 2, 3))


# ----------------------------------------------------------------------------
# FPN2D forward
# ----------------------------------------------------------------------------
def init_params(key, cin=4, hidden=8, n_classes=2):
    k1, k2, k3, k4 = jax.random.split(key, 4)
    return {
        "w1": jax.random.normal(k1, (hidden, cin, 3, 3), jnp.float32) * 0.1,
        "b1": jax.random.normal(k2, (hidden,), jnp.float32) * 0.01,
        "w2": jax.random.normal(k3, (n_classes, hidden, 3, 3), jnp.float32) * 0.1,
        "b2": jax.random.normal(k4, (n_classes,), jnp.float32) * 0.01,
    }


def fpn2d_forward(params, x):
    # fused = x[config.fusion_modality][:, :, :, 0, :]  -> 4D "NCHW" tensor
    fused = x[FUSION_MODALITY][:, :, :, 0, :]

    # TODO(synk): ModifiedUnet2DLevel5 is defined by an external .ini config
    # and is not available; stand-in backbone = conv3x3+ReLU -> conv3x3.
    # torch.sigmoid is fused into the kernel (elementwise, commutes with the
    # later permute).
    seg4d = fused_conv_backbone(params, fused)

    # Backbone output reinterpreted as 5D NCDHW (singleton depth), then
    # seg.permute(0, 1, 2, 4, 3).
    n, c, hh, ww = seg4d.shape
    seg = seg4d.reshape(n, c, 1, hh, ww)
    seg = jnp.transpose(seg, (0, 1, 2, 4, 3))

    # if seg.shape != mask.shape: F.interpolate(..., mode='trilinear')
    # TODO(synk): jax.image.resize trilinear matches align_corners=False only.
    if seg.shape != x["mask"].shape:
        target = seg.shape[:2] + x["mask"].shape[2:]
        seg = jax.image.resize(seg, target, method="trilinear")
    return {"prediction": seg}


if __name__ == "__main__":
    key = jax.random.PRNGKey(0)
    kp, kx = jax.random.split(key)

    params = init_params(kp, cin=4, hidden=8, n_classes=2)

    # fusion modality: (N=2, C=4, D=16, 3, W=16); mask: matches permuted seg.
    x = {
        FUSION_MODALITY: jax.random.normal(kx, (2, 4, 16, 3, 16), jnp.float32),
        "mask": jnp.zeros((2, 2, 1, 16, 16), jnp.float32),
    }

    out = fpn2d_forward(params, x)
    pred = jax.block_until_ready(out["prediction"])

    assert pred.shape == (2, 2, 1, 16, 16)
    assert bool(jnp.all(jnp.isfinite(pred)))
    assert bool(jnp.all((pred >= 0.0) & (pred <= 1.0)))  # sigmoid range
    print("KERNEL_OK")
</pallas_src>

<mosaic_0001>
module attributes {stable_mosaic.version = 11 : i64} {
  func.func @_fused_backbone_kernel(%arg0: i32, %arg1: memref<4x896xf32, #tpu.memory_space<vmem>>, %arg2: memref<8x36xbf16, #tpu.memory_space<vmem>>, %arg3: memref<8x1xf32, #tpu.memory_space<vmem>>, %arg4: memref<8x72xbf16, #tpu.memory_space<vmem>>, %arg5: memref<8x1xf32, #tpu.memory_space<vmem>>, %arg6: memref<1x768xf32, #tpu.memory_space<vmem>>, %arg7: memref<8x768xf32, #tpu.memory_space<vmem>>, %arg8: memref<36x768xbf16, #tpu.memory_space<vmem>>, %arg9: memref<8x896xf32, #tpu.memory_space<vmem>>, %arg10: memref<72x768xbf16, #tpu.memory_space<vmem>>) attributes {dimension_semantics = [#tpu.dimension_semantics<arbitrary>], iteration_bounds = array<i64: 1>, scalar_prefetch = 0 : i64, scratch_operands = 3 : i64, tpu.core_type = #tpu.core_type<tc>, window_params = [{pipeline_mode = #tpu.pipeline_mode<synchronous>, transform_indices = @transform_0, window_bounds = array<i64: 4, 896>}, {pipeline_mode = #tpu.pipeline_mode<synchronous>, transform_indices = @transform_1, window_bounds = array<i64: 8, 36>}, {pipeline_mode = #tpu.pipeline_mode<synchronous>, transform_indices = @transform_2, window_bounds = array<i64: 8, 1>}, {pipeline_mode = #tpu.pipeline_mode<synchronous>, transform_indices = @transform_3, window_bounds = array<i64: 8, 72>}, {pipeline_mode = #tpu.pipeline_mode<synchronous>, transform_indices = @transform_4, window_bounds = array<i64: 8, 1>}, {pipeline_mode = #tpu.pipeline_mode<synchronous>, transform_indices = @transform_5, window_bounds = array<i64: 1, 768>}, {pipeline_mode = #tpu.pipeline_mode<synchronous>, transform_indices = @transform_6, window_bounds = array<i64: 8, 768>}]} {
    %c0 = arith.constant 0 : index
    %c0_0 = arith.constant 0 : index
    %0 = vector.load %arg1[%c0, %c0_0] : memref<4x896xf32, #tpu.memory_space<vmem>>, vector<4x768xf32>
    %1 = arith.truncf %0 : vector<4x768xf32> to vector<4x768xbf16>
    %c0_1 = arith.constant 0 : index
    %c0_2 = arith.constant 0 : index
    %2 = vector.load %arg8[%c0_1, %c0_2] : memref<36x768xbf16, #tpu.memory_space<vmem>>, vector<4x768xbf16>
    tpu.vector_store %arg8[%c0_1, %c0_2], %1 {strides = array<i32>} : memref<36x768xbf16, #tpu.memory_space<vmem>>, vector<4x768xbf16>,
    %c0_3 = arith.constant 0 : index
    %c1 = arith.constant 1 : index
    %3 = vector.load %arg1[%c0_3, %c1] : memref<4x896xf32, #tpu.memory_space<vmem>>, vector<4x768xf32>
    %4 = arith.truncf %3 : vector<4x768xf32> to vector<4x768xbf16>
    %c4 = arith.constant 4 : index
    %c0_4 = arith.constant 0 : index
    %5 = vector.load %arg8[%c4, %c0_4] : memref<36x768xbf16, #tpu.memory_space<vmem>>, vector<4x768xbf16>
    tpu.vector_store %arg8[%c4, %c0_4], %4 {strides = array<i32>} : memref<36x768xbf16, #tpu.memory_space<vmem>>, vector<4x768xbf16>,
    %c0_5 = arith.constant 0 : index
    %c2 = arith.constant 2 : index
    %6 = vector.load %arg1[%c0_5, %c2] : memref<4x896xf32, #tpu.memory_space<vmem>>, vector<4x768xf32>
    %7 = arith.truncf %6 : vector<4x768xf32> to vector<4x768xbf16>
    %c8 = arith.constant 8 : index
    %c0_6 = arith.constant 0 : index
    %8 = vector.load %arg8[%c8, %c0_6] : memref<36x768xbf16, #tpu.memory_space<vmem>>, vector<4x768xbf16>
    tpu.vector_store %arg8[%c8, %c0_6], %7 {strides = array<i32>} : memref<36x768xbf16, #tpu.memory_space<vmem>>, vector<4x768xbf16>,
    %c0_7 = arith.constant 0 : index
    %c18 = arith.constant 18 : index
    %9 = vector.load %arg1[%c0_7, %c18] : memref<4x896xf32, #tpu.memory_space<vmem>>, vector<4x768xf32>
    %10 = arith.truncf %9 : vector<4x768xf32> to vector<4x768xbf16>
    %c12 = arith.constant 12 : index
    %c0_8 = arith.constant 0 : index
    %11 = vector.load %arg8[%c12, %c0_8] : memref<36x768xbf16, #tpu.memory_space<vmem>>, vector<4x768xbf16>
    tpu.vector_store %arg8[%c12, %c0_8], %10 {strides = array<i32>} : memref<36x768xbf16, #tpu.memory_space<vmem>>, vector<4x768xbf16>,
    %c0_9 = arith.constant 0 : index
    %c19 = arith.constant 19 : index
    %12 = vector.load %arg1[%c0_9, %c19] : memref<4x896xf32, #tpu.memory_space<vmem>>, vector<4x768xf32>
    %13 = arith.truncf %12 : vector<4x768xf32> to vector<4x768xbf16>
    %c16 = arith.constant 16 : index
    %c0_10 = arith.constant 0 : index
    %14 = vector.load %arg8[%c16, %c0_10] : memref<36x768xbf16, #tpu.memory_space<vmem>>, vector<4x768xbf16>
    tpu.vector_store %arg8[%c16, %c0_10], %13 {strides = array<i32>} : memref<36x768xbf16, #tpu.memory_space<vmem>>, vector<4x768xbf16>,
    %c0_11 = arith.constant 0 : index
    %c20 = arith.constant 20 : index
    %15 = vector.load %arg1[%c0_11, %c20] : memref<4x896xf32, #tpu.memory_space<vmem>>, vector<4x768xf32>
    %16 = arith.truncf %15 : vector<4x768xf32> to vector<4x768xbf16>
    %c20_12 = arith.constant 20 : index
    %c0_13 = arith.constant 0 : index
    %17 = vector.load %arg8[%c20_12, %c0_13] : memref<36x768xbf16, #tpu.memory_space<vmem>>, vector<4x768xbf16>
    tpu.vector_store %arg8[%c20_12, %c0_13], %16 {strides = array<i32>} : memref<36x768xbf16, #tpu.memory_space<vmem>>, vector<4x768xbf16>,
    %c0_14 = arith.constant 0 : index
    %c36 = arith.constant 36 : index
    %18 = vector.load %arg1[%c0_14, %c36] : memref<4x896xf32, #tpu.memory_space<vmem>>, vector<4x768xf32>
    %19 = arith.truncf %18 : vector<4x768xf32> to vector<4x768xbf16>
    %c24 = arith.constant 24 : index
    %c0_15 = arith.constant 0 : index
    %20 = vector.load %arg8[%c24, %c0_15] : memref<36x768xbf16, #tpu.memory_space<vmem>>, vector<4x768xbf16>
    tpu.vector_store %arg8[%c24, %c0_15], %19 {strides = array<i32>} : memref<36x768xbf16, #tpu.memory_space<vmem>>, vector<4x768xbf16>,
    %c0_16 = arith.constant 0 : index
    %c37 = arith.constant 37 : index
    %21 = vector.load %arg1[%c0_16, %c37] : memref<4x896xf32, #tpu.memory_space<vmem>>, vector<4x768xf32>
    %22 = arith.truncf %21 : vector<4x768xf32> to vector<4x768xbf16>
    %c28 = arith.constant 28 : index
    %c0_17 = arith.constant 0 : index
    %23 = vector.load %arg8[%c28, %c0_17] : memref<36x768xbf16, #tpu.memory_space<vmem>>, vector<4x768xbf16>
    tpu.vector_store %arg8[%c28, %c0_17], %22 {strides = array<i32>} : memref<36x768xbf16, #tpu.memory_space<vmem>>, vector<4x768xbf16>,
    %c0_18 = arith.constant 0 : index
    %c38 = arith.constant 38 : index
    %24 = vector.load %arg1[%c0_18, %c38] : memref<4x896xf32, #tpu.memory_space<vmem>>, vector<4x768xf32>
    %25 = arith.truncf %24 : vector<4x768xf32> to vector<4x768xbf16>
    %c32 = arith.constant 32 : index
    %c0_19 = arith.constant 0 : index
    %26 = vector.load %arg8[%c32, %c0_19] : memref<36x768xbf16, #tpu.memory_space<vmem>>, vector<4x768xbf16>
    tpu.vector_store %arg8[%c32, %c0_19], %25 {strides = array<i32>} : memref<36x768xbf16, #tpu.memory_space<vmem>>, vector<4x768xbf16>,
    %c0_20 = arith.constant 0 : index
    %c0_21 = arith.constant 0 : index
    %27 = vector.load %arg2[%c0_20, %c0_21] : memref<8x36xbf16, #tpu.memory_space<vmem>>, vector<8x36xbf16>
    %c0_22 = arith.constant 0 : index
    %c0_23 = arith.constant 0 : index
    %28 = vector.load %arg8[%c0_22, %c0_23] : memref<36x768xbf16, #tpu.memory_space<vmem>>, vector<36x768xbf16>
    %cst = arith.constant dense<0.000000e+00> : vector<8x768xf32>
    %29 = tpu.matmul %27, %28, %cst {dimension_numbers = #tpu.dot_dimension_numbers<[1], [0], [0], [1], [0, 0, 1, 1], [], []>} : vector<8x36xbf16>, vector<36x768xbf16>, vector<8x768xf32> -> vector<8x768xf32>
    %c0_24 = arith.constant 0 : index
    %c0_25 = arith.constant 0 : index
    %30 = vector.load %arg3[%c0_24, %c0_25] : memref<8x1xf32, #tpu.memory_space<vmem>>, vector<8x1xf32>
    %31 = vector.broadcast %30 : vector<8x1xf32> to vector<8x768xf32>
    %32 = arith.addf %29, %31 : vector<8x768xf32>
    %cst_26 = arith.constant 0.000000e+00 : f32
    %33 = vector.broadcast %cst_26 : f32 to vector<8x768xf32>
    %34 = arith.maximumf %32, %33 : vector<8x768xf32>
    %c0_27 = arith.constant 0 : index
    %c0_28 = arith.constant 0 : index
    %35 = vector.load %arg6[%c0_27, %c0_28] : memref<1x768xf32, #tpu.memory_space<vmem>>, vector<1x768xf32>
    %36 = vector.broadcast %35 : vector<1x768xf32> to vector<8x768xf32>
    %37 = arith.mulf %34, %36 : vector<8x768xf32>
    %cst_29 = arith.constant 0.000000e+00 : f32
    %38 = vector.broadcast %cst_29 : f32 to vector<8x896xf32>
    %c0_30 = arith.constant 0 : index
    %c0_31 = arith.constant 0 : index
    %39 = vector.load %arg9[%c0_30, %c0_31] : memref<8x896xf32, #tpu.memory_space<vmem>>, vector<8x896xf32>
    tpu.vector_store %arg9[%c0_30, %c0_31], %38 {strides = array<i32>} : memref<8x896xf32, #tpu.memory_space<vmem>>, vector<8x896xf32>,
    %c0_32 = arith.constant 0 : index
    %c19_33 = arith.constant 19 : index
    %40 = vector.load %arg9[%c0_32, %c19_33] : memref<8x896xf32, #tpu.memory_space<vmem>>, vector<8x768xf32>
    tpu.vector_store %arg9[%c0_32, %c19_33], %37 {strides = array<i32>} : memref<8x896xf32, #tpu.memory_space<vmem>>, vector<8x768xf32>,
    %c0_34 = arith.constant 0 : index
    %c0_35 = arith.constant 0 : index
    %41 = vector.load %arg9[%c0_34, %c0_35] : memref<8x896xf32, #tpu.memory_space<vmem>>, vector<8x768xf32>
    %42 = arith.truncf %41 : vector<8x768xf32> to vector<8x768xbf16>
    %c0_36 = arith.constant 0 : index
    %c0_37 = arith.constant 0 : index
    %43 = vector.load %arg10[%c0_36, %c0_37] : memref<72x768xbf16, #tpu.memory_space<vmem>>, vector<8x768xbf16>
    tpu.vector_store %arg10[%c0_36, %c0_37], %42 {strides = array<i32>} : memref<72x768xbf16, #tpu.memory_space<vmem>>, vector<8x768xbf16>,
    %c0_38 = arith.constant 0 : index
    %c1_39 = arith.constant 1 : index
    %44 = vector.load %arg9[%c0_38, %c1_39] : memref<8x896xf32, #tpu.memory_space<vmem>>, vector<8x768xf32>
    %45 = arith.truncf %44 : vector<8x768xf32> to vector<8x768xbf16>
    %c8_40 = arith.constant 8 : index
    %c0_41 = arith.constant 0 : index
    %46 = vector.load %arg10[%c8_40, %c0_41] : memref<72x768xbf16, #tpu.memory_space<vmem>>, vector<8x768xbf16>
    tpu.vector_store %arg10[%c8_40, %c0_41], %45 {strides = array<i32>} : memref<72x768xbf16, #tpu.memory_space<vmem>>, vector<8x768xbf16>,
    %c0_42 = arith.constant 0 : index
    %c2_43 = arith.constant 2 : index
    %47 = vector.load %arg9[%c0_42, %c2_43] : memref<8x896xf32, #tpu.memory_space<vmem>>, vector<8x768xf32>
    %48 = arith.truncf %47 : vector<8x768xf32> to vector<8x768xbf16>
    %c16_44 = arith.constant 16 : index
    %c0_45 = arith.constant 0 : index
    %49 = vector.load %arg10[%c16_44, %c0_45] : memref<72x768xbf16, #tpu.memory_space<vmem>>, vector<8x768xbf16>
    tpu.vector_store %arg10[%c16_44, %c0_45], %48 {strides = array<i32>} : memref<72x768xbf16, #tpu.memory_space<vmem>>, vector<8x768xbf16>,
    %c0_46 = arith.constant 0 : index
    %c18_47 = arith.constant 18 : index
    %50 = vector.load %arg9[%c0_46, %c18_47] : memref<8x896xf32, #tpu.memory_space<vmem>>, vector<8x768xf32>
    %51 = arith.truncf %50 : vector<8x768xf32> to vector<8x768xbf16>
    %c24_48 = arith.constant 24 : index
    %c0_49 = arith.constant 0 : index
    %52 = vector.load %arg10[%c24_48, %c0_49] : memref<72x768xbf16, #tpu.memory_space<vmem>>, vector<8x768xbf16>
    tpu.vector_store %arg10[%c24_48, %c0_49], %51 {strides = array<i32>} : memref<72x768xbf16, #tpu.memory_space<vmem>>, vector<8x768xbf16>,
    %c0_50 = arith.constant 0 : index
    %c19_51 = arith.constant 19 : index
    %53 = vector.load %arg9[%c0_50, %c19_51] : memref<8x896xf32, #tpu.memory_space<vmem>>, vector<8x768xf32>
    %54 = arith.truncf %53 : vector<8x768xf32> to vector<8x768xbf16>
    %c32_52 = arith.constant 32 : index
    %c0_53 = arith.constant 0 : index
    %55 = vector.load %arg10[%c32_52, %c0_53] : memref<72x768xbf16, #tpu.memory_space<vmem>>, vector<8x768xbf16>
    tpu.vector_store %arg10[%c32_52, %c0_53], %54 {strides = array<i32>} : memref<72x768xbf16, #tpu.memory_space<vmem>>, vector<8x768xbf16>,
    %c0_54 = arith.constant 0 : index
    %c20_55 = arith.constant 20 : index
    %56 = vector.load %arg9[%c0_54, %c20_55] : memref<8x896xf32, #tpu.memory_space<vmem>>, vector<8x768xf32>
    %57 = arith.truncf %56 : vector<8x768xf32> to vector<8x768xbf16>
    %c40 = arith.constant 40 : index
    %c0_56 = arith.constant 0 : index
    %58 = vector.load %arg10[%c40, %c0_56] : memref<72x768xbf16, #tpu.memory_space<vmem>>, vector<8x768xbf16>
    tpu.vector_store %arg10[%c40, %c0_56], %57 {strides = array<i32>} : memref<72x768xbf16, #tpu.memory_space<vmem>>, vector<8x768xbf16>,
    %c0_57 = arith.constant 0 : index
    %c36_58 = arith.constant 36 : index
    %59 = vector.load %arg9[%c0_57, %c36_58] : memref<8x896xf32, #tpu.memory_space<vmem>>, vector<8x768xf32>
    %60 = arith.truncf %59 : vector<8x768xf32> to vector<8x768xbf16>
    %c48 = arith.constant 48 : index
    %c0_59 = arith.constant 0 : index
    %61 = vector.load %arg10[%c48, %c0_59] : memref<72x768xbf16, #tpu.memory_space<vmem>>, vector<8x768xbf16>
    tpu.vector_store %arg10[%c48, %c0_59], %60 {strides = array<i32>} : memref<72x768xbf16, #tpu.memory_space<vmem>>, vector<8x768xbf16>,
    %c0_60 = arith.constant 0 : index
    %c37_61 = arith.constant 37 : index
    %62 = vector.load %arg9[%c0_60, %c37_61] : memref<8x896xf32, #tpu.memory_space<vmem>>, vector<8x768xf32>
    %63 = arith.truncf %62 : vector<8x768xf32> to vector<8x768xbf16>
    %c56 = arith.constant 56 : index
    %c0_62 = arith.constant 0 : index
    %64 = vector.load %arg10[%c56, %c0_62] : memref<72x768xbf16, #tpu.memory_space<vmem>>, vector<8x768xbf16>
    tpu.vector_store %arg10[%c56, %c0_62], %63 {strides = array<i32>} : memref<72x768xbf16, #tpu.memory_space<vmem>>, vector<8x768xbf16>,
    %c0_63 = arith.constant 0 : index
    %c38_64 = arith.constant 38 : index
    %65 = vector.load %arg9[%c0_63, %c38_64] : memref<8x896xf32, #tpu.memory_space<vmem>>, vector<8x768xf32>
    %66 = arith.truncf %65 : vector<8x768xf32> to vector<8x768xbf16>
    %c64 = arith.constant 64 : index
    %c0_65 = arith.constant 0 : index
    %67 = vector.load %arg10[%c64, %c0_65] : memref<72x768xbf16, #tpu.memory_space<vmem>>, vector<8x768xbf16>
    tpu.vector_store %arg10[%c64, %c0_65], %66 {strides = array<i32>} : memref<72x768xbf16, #tpu.memory_space<vmem>>, vector<8x768xbf16>,
    %c0_66 = arith.constant 0 : index
    %c0_67 = arith.constant 0 : index
    %68 = vector.load %arg4[%c0_66, %c0_67] : memref<8x72xbf16, #tpu.memory_space<vmem>>, vector<8x72xbf16>
    %c0_68 = arith.constant 0 : index
    %c0_69 = arith.constant 0 : index
    %69 = vector.load %arg10[%c0_68, %c0_69] : memref<72x768xbf16, #tpu.memory_space<vmem>>, vector<72x768xbf16>
    %cst_70 = arith.constant dense<0.000000e+00> : vector<8x768xf32>
    %70 = tpu.matmul %68, %69, %cst_70 {dimension_numbers = #tpu.dot_dimension_numbers<[1], [0], [0], [1], [0, 0, 1, 1], [], []>} : vector<8x72xbf16>, vector<72x768xbf16>, vector<8x768xf32> -> vector<8x768xf32>
    %c0_71 = arith.constant 0 : index
    %c0_72 = arith.constant 0 : index
    %71 = vector.load %arg5[%c0_71, %c0_72] : memref<8x1xf32, #tpu.memory_space<vmem>>, vector<8x1xf32>
    %72 = vector.broadcast %71 : vector<8x1xf32> to vector<8x768xf32>
    %73 = arith.addf %70, %72 : vector<8x768xf32>
    %74 = arith.negf %73 : vector<8x768xf32>
    %75 = math.exp %74 : vector<8x768xf32>
    %cst_73 = arith.constant 1.000000e+00 : f32
    %76 = vector.broadcast %cst_73 : f32 to vector<8x768xf32>
    %77 = arith.addf %76, %75 : vector<8x768xf32>
    %78 = arith.divf %76, %77 : vector<8x768xf32>
    %c0_74 = arith.constant 0 : index
    %c0_75 = arith.constant 0 : index
    %79 = vector.load %arg7[%c0_74, %c0_75] : memref<8x768xf32, #tpu.memory_space<vmem>>, vector<8x768xf32>
    tpu.vector_store %arg7[%c0_74, %c0_75], %78 {strides = array<i32>} : memref<8x768xf32, #tpu.memory_space<vmem>>, vector<8x768xf32>,
    return
  }
  func.func @transform_0(%arg0: i32) -> (i32, i32) {
    %c0_i32 = arith.constant 0 : i32
    %c0_i32_0 = arith.constant 0 : i32
    %c0_i32_1 = arith.constant 0 : i32
    return %c0_i32, %c0_i32_0 : i32, i32
  }
  func.func @transform_1(%arg0: i32) -> (i32, i32) {
    %c0_i32 = arith.constant 0 : i32
    %c0_i32_0 = arith.constant 0 : i32
    %c0_i32_1 = arith.constant 0 : i32
    return %c0_i32, %c0_i32_0 : i32, i32
  }
  func.func @transform_2(%arg0: i32) -> (i32, i32) {
    %c0_i32 = arith.constant 0 : i32
    %c0_i32_0 = arith.constant 0 : i32
    %c0_i32_1 = arith.constant 0 : i32
    return %c0_i32, %c0_i32_0 : i32, i32
  }
  func.func @transform_3(%arg0: i32) -> (i32, i32) {
    %c0_i32 = arith.constant 0 : i32
    %c0_i32_0 = arith.constant 0 : i32
    %c0_i32_1 = arith.constant 0 : i32
    return %c0_i32, %c0_i32_0 : i32, i32
  }
  func.func @transform_4(%arg0: i32) -> (i32, i32) {
    %c0_i32 = arith.constant 0 : i32
    %c0_i32_0 = arith.constant 0 : i32
    %c0_i32_1 = arith.constant 0 : i32
    return %c0_i32, %c0_i32_0 : i32, i32
  }
  func.func @transform_5(%arg0: i32) -> (i32, i32) {
    %c0_i32 = arith.constant 0 : i32
    %c0_i32_0 = arith.constant 0 : i32
    %c0_i32_1 = arith.constant 0 : i32
    return %c0_i32, %c0_i32_0 : i32, i32
  }
  func.func @transform_6(%arg0: i32) -> (i32, i32) {
    %c0_i32 = arith.constant 0 : i32
    %c0_i32_0 = arith.constant 0 : i32
    %c0_i32_1 = arith.constant 0 : i32
    return %c0_i32, %c0_i32_0 : i32, i32
  }
}

</mosaic_0001>

<llo_original>
// kernel: tpu_custom_call.1
$region0: #{tpu_custom_call.1}
  #allocation0 [shape = 'u32[]', space=smem, size = 0x4, offset = 0x4, fixed_abs, tag = 'smem constant byte address 0x4 - core index']
  #allocation1 [shape = 'u32[144,128]{1,0:T(1,128)}', space=vmem, size = 0x12000, scoped, tag = 'internal scratch']
  #allocation2 [shape = 'bf16[36,768]{1,0:T(8,128)(2,1)}', space=vmem, size = 0xf000, scoped, tag = 'scratch operand']
  #allocation3 [shape = 'f32[8,896]{1,0:T(8,128)}', space=vmem, size = 0x7000, scoped, tag = 'scratch operand']
  #allocation4 [shape = 'bf16[72,768]{1,0:T(8,128)(2,1)}', space=vmem, size = 0x1b000, scoped, tag = 'scratch operand']
  %s0 = inlined_call_operand.hbm [shape: f32[4,896], index: 0, kind: input, shape index: {}]
  %s1 = inlined_call_operand.vmem [shape: bf16[8,36], index: 1, kind: input, shape index: {}]
  %s2 = inlined_call_operand.vmem [shape: f32[8,1], index: 2, kind: input, shape index: {}]
  %s3 = inlined_call_operand.vmem [shape: bf16[8,72], index: 3, kind: input, shape index: {}]
  %s4 = inlined_call_operand.vmem [shape: f32[8,1], index: 4, kind: input, shape index: {}]
  %s5 = inlined_call_operand.vmem [shape: f32[1,768], index: 5, kind: input, shape index: {}]
  %s6 = inlined_call_operand.hbm [shape: f32[8,768], index: 6, kind: output, shape index: {}]
  %s7 = sld [smem:[#allocation0]]
  $region38: #{tpu_custom_call.1} parent=0
    _
  %s9 = ssub.s32 1, %s7
  %s10 = scalar_select 0, %s9, %s7
  $region1: #{tpu_custom_call.1} parent=0
    #allocation5 [shape = 'u8[14336]{0}', space=vmem, size = 0x3800, scoped, tag = 'input window, operand 0, single buffered']
    #allocation6 [shape = 's32[1]{0}', space=sflag, size = 0x4, scoped, tag = 'scoped memory for tpu_custom_call.1']
    #allocation7 [shape = 's32[1]{0}', space=sflag, size = 0x4, scoped, tag = 'scoped memory for tpu_custom_call.1']
    #allocation8 [shape = 'u8[24576]{0}', space=vmem, size = 0x6000, scoped, tag = 'output window, operand 0, single buffered']
    %11 = vsyncpa [#allocation6], 0
    %12 = vsyncpa [#allocation7], 0
    // Predicated region
    $region2: #{tpu_custom_call.1} parent=1 // pred_check
      _
    $region3: #{tpu_custom_call.1} parent=1 // pred_check_branch
      %14 = sbr.rel (0) target = $region5
    $region4: #{tpu_custom_call.1} parent=1 // pred_region
      %s16 = ssub.s32 448, 448
      %17 = vsyncadd [#allocation6], %s16
      %s19 = sshll.u32 [#allocation5], 4
      %s20 = int_to_ptr.vmem [resolvable:$true] %s19
      %22 = dma.hbm_to_vmem [thread:$0]  %s0, 448, %s20, [#allocation6]
    $region5: #{tpu_custom_call.1} parent=1 // pred_fallthru
      _
    // Predicated region
    $region6: #{tpu_custom_call.1} parent=1 // pred_check
      _
    $region7: #{tpu_custom_call.1} parent=1 // pred_check_branch
      %24 = sbr.rel (0) target = $region9
    $region8: #{tpu_custom_call.1} parent=1 // pred_region
      _
    $region9: #{tpu_custom_call.1} parent=1 // pred_fallthru
      _
    // Predicated region
    $region10: #{tpu_custom_call.1} parent=1 // pred_check
      _
    $region11: #{tpu_custom_call.1} parent=1 // pred_check_branch
      %26 = sbr.rel (0) target = $region13
    $region12: #{tpu_custom_call.1} parent=1 // pred_region
      _
    $region13: #{tpu_custom_call.1} parent=1 // pred_fallthru
      _
    // Predicated region
    $region14: #{tpu_custom_call.1} parent=1 // pred_check
      _
    $region15: #{tpu_custom_call.1} parent=1 // pred_check_branch
      %28 = sbr.rel (0) target = $region17
    $region16: #{tpu_custom_call.1} parent=1 // pred_region
      _
    $region17: #{tpu_custom_call.1} parent=1 // pred_fallthru
      _
    // Predicated region
    $region18: #{tpu_custom_call.1} parent=1 // pred_check
      _
    $region19: #{tpu_custom_call.1} parent=1 // pred_check_branch
      %30 = sbr.rel (0) target = $region21
    $region20: #{tpu_custom_call.1} parent=1 // pred_region
      _
    $region21: #{tpu_custom_call.1} parent=1 // pred_fallthru
      _
    // Predicated region
    $region22: #{tpu_custom_call.1} parent=1 // pred_check
      _
    $region23: #{tpu_custom_call.1} parent=1 // pred_check_branch
      %32 = sbr.rel (0) target = $region25
    $region24: #{tpu_custom_call.1} parent=1 // pred_region
      _
    $region25: #{tpu_custom_call.1} parent=1 // pred_fallthru
      _
    // Predicated region
    $region26: #{tpu_custom_call.1} parent=1 // pred_check
      _
    $region27: #{tpu_custom_call.1} parent=1 // pred_check_branch
      %34 = sbr.rel (0) target = $region29
    $region28: #{tpu_custom_call.1} parent=1 // pred_region
      %35 = dma.done [#allocation6], 448
    $region29: #{tpu_custom_call.1} parent=1 // pred_fallthru
      _
    %v37 = vld [vmem:[#allocation5] sm:$0xff]
    %v38 = vld [vmem:[#allocation5 + $0x8] sm:$0xff]
    %v39 = vld [vmem:[#allocation5 + $0x10] sm:$0xff]
    %v43 = vcombine.high %v37, %v37
    %v44 = vcombine.high %v38, %v38
    %v45 = vcombine.high %v39, %v39
    %v49 = vpack.c.bf16 %v37, %v37
    %v50 = vpack.c.bf16 %v43, %v43
    %v51 = vpack.c.bf16 %v38, %v38
    %v52 = vpack.c.bf16 %v44, %v44
    %v53 = vpack.c.bf16 %v39, %v39
    %v54 = vpack.c.bf16 %v45, %v45
    %v61 = vunpack.c.l.b16 %v49
    %v62 = vunpack.c.l.b16 %v50
    %v63 = vunpack.c.l.b16 %v51
    %v64 = vunpack.c.l.b16 %v52
    %v65 = vunpack.c.l.b16 %v53
    %v66 = vunpack.c.l.b16 %v54
    %v67 = vpack.c.b16 %v62, %v61
    %v68 = vpack.c.b16 %v64, %v63
    %v69 = vpack.c.b16 %v66, %v65
    %73 = vst [vmem:[#allocation2] sm:$0x33] %v67
    %74 = vst [vmem:[#allocation2 + $0x8] sm:$0x33] %v68
    %75 = vst [vmem:[#allocation2 + $0x10] sm:$0x33] %v69
    %v76 = vld [vmem:[#allocation5] sm:$0xff]
    %v77 = vld [vmem:[#allocation5 + $0x8] sm:$0xff]
    %v78 = vld [vmem:[#allocation5 + $0x10] sm:$0xff]
    %v79 = vld [vmem:[#allocation5 + $0x18] sm:$0xf]
    %v83 = vcombine.high %v76, %v76
    %v84 = vcombine.high %v77, %v77
    %v85 = vcombine.high %v78, %v78
    %v89 = vpack.c.bf16 %v76, %v76
    %v90 = vpack.c.bf16 %v83, %v83
    %v91 = vpack.c.bf16 %v77, %v77
    %v92 = vpack.c.bf16 %v84, %v84
    %v93 = vpack.c.bf16 %v78, %v78
    %v94 = vpack.c.bf16 %v85, %v85
    %v95 = vpack.c.bf16 %v79, %v79
    %v103 = vunpack.c.l.b16 %v89
    %v104 = vunpack.c.l.b16 %v90
    %v105 = vunpack.c.l.b16 %v91
    %v106 = vunpack.c.l.b16 %v92
    %v107 = vunpack.c.l.b16 %v93
    %v108 = vunpack.c.l.b16 %v94
    %v109 = vunpack.c.l.b16 %v95
    %v110 = vpack.c.b16 %v104, %v103
    %v111 = vpack.c.b16 %v106, %v105
    %v112 = vpack.c.b16 %v108, %v107
    %v113 = vpack.c.b16 %v109, %v109
    %v114 = vrot.slane %v110, 6
    %v115 = vrot.slane %v111, 6
    %v116 = vrot.slane %v112, 6
    %v117 = vrot.slane %v113, 6
    %118 = vrot.lane.b32.xlu0 %v114, 127
    %v119 = vpop.permute.xlu0 %118
    %120 = vrot.lane.b32.xlu0 %v115, 127
    %v121 = vpop.permute.xlu0 %120
    %122 = vrot.lane.b32.xlu0 %v116, 127
    %v123 = vpop.permute.xlu0 %122
    %124 = vrot.lane.b32.xlu0 %v117, 127
    %v125 = vpop.permute.xlu0 %124
    %v126 = vrot.slane %v119, 4
    %v127 = vrot.slane %v121, 4
    %v128 = vrot.slane %v123, 4
    %v129 = vrot.slane %v125, 4
    %vm130 = vcmask 1043456
    %v131 = vsel %vm130, %v126, %v127
    %vm132 = vcmask 1039360
    %v133 = vsel %vm132, %v119, %v131
    %v134 = vsel %vm130, %v127, %v128
    %v135 = vsel %vm132, %v121, %v134
    %v136 = vsel %vm130, %v128, %v129
    %v137 = vsel %vm132, %v123, %v136
    %141 = vst [vmem:[#allocation2] sm:$0xcc] %v133
    %142 = vst [vmem:[#allocation2 + $0x8] sm:$0xcc] %v135
    %143 = vst [vmem:[#allocation2 + $0x10] sm:$0xcc] %v137
    %v144 = vld [vmem:[#allocation5] sm:$0xff]
    %v145 = vld [vmem:[#allocation5 + $0x8] sm:$0xff]
    %v146 = vld [vmem:[#allocation5 + $0x10] sm:$0xff]
    %v147 = vld [vmem:[#allocation5 + $0x18] sm:$0xf]
    %v151 = vcombine.high %v144, %v144
    %v152 = vcombine.high %v145, %v145
    %v153 = vcombine.high %v146, %v146
    %v157 = vpack.c.bf16 %v144, %v144
    %v158 = vpack.c.bf16 %v151, %v151
    %v159 = vpack.c.bf16 %v145, %v145
    %v160 = vpack.c.bf16 %v152, %v152
    %v161 = vpack.c.bf16 %v146, %v146
    %v162 = vpack.c.bf16 %v153, %v153
    %v163 = vpack.c.bf16 %v147, %v147
    %v171 = vunpack.c.l.b16 %v157
    %v172 = vunpack.c.l.b16 %v158
    %v173 = vunpack.c.l.b16 %v159
    %v174 = vunpack.c.l.b16 %v160
    %v175 = vunpack.c.l.b16 %v161
    %v176 = vunpack.c.l.b16 %v162
    %v177 = vunpack.c.l.b16 %v163
    %v178 = vpack.c.b16 %v172, %v171
    %v179 = vpack.c.b16 %v174, %v173
    %v180 = vpack.c.b16 %v176, %v175
    %v181 = vpack.c.b16 %v177, %v177
    %182 = vrot.lane.b32.xlu0 %v178, 126
    %v183 = vpop.permute.xlu0 %182
    %184 = vrot.lane.b32.xlu0 %v179, 126
    %v185 = vpop.permute.xlu0 %184
    %186 = vrot.lane.b32.xlu0 %v180, 126
    %v187 = vpop.permute.xlu0 %186
    %188 = vrot.lane.b32.xlu0 %v181, 126
    %v189 = vpop.permute.xlu0 %188
    %v190 = vrot.slane %v183, 4
    %v191 = vrot.slane %v185, 4
    %v192 = vrot.slane %v187, 4
    %v193 = vrot.slane %v189, 4
    %v194 = vsel %vm130, %v190, %v191
    %vm195 = vcmask 1031168
    %v196 = vsel %vm195, %v183, %v194
    %v197 = vsel %vm130, %v191, %v192
    %v198 = vsel %vm195, %v185, %v197
    %v199 = vsel %vm130, %v192, %v193
    %v200 = vsel %vm195, %v187, %v199
    %204 = vst [vmem:[#allocation2 + $0x18] sm:$0x33] %v196
    %205 = vst [vmem:[#allocation2 + $0x20] sm:$0x33] %v198
    %206 = vst [vmem:[#allocation2 + $0x28] sm:$0x33] %v200
    %v207 = vld [vmem:[#allocation5] sm:$0xff]
    %v208 = vld [vmem:[#allocation5 + $0x8] sm:$0xff]
    %v209 = vld [vmem:[#allocation5 + $0x10] sm:$0xff]
    %v210 = vld [vmem:[#allocation5 + $0x18] sm:$0xf]
    %v214 = vcombine.high %v207, %v207
    %v215 = vcombine.high %v208, %v208
    %v216 = vcombine.high %v209, %v209
    %v220 = vpack.c.bf16 %v207, %v207
    %v221 = vpack.c.bf16 %v214, %v214
    %v222 = vpack.c.bf16 %v208, %v208
    %v223 = vpack.c.bf16 %v215, %v215
    %v224 = vpack.c.bf16 %v209, %v209
    %v225 = vpack.c.bf16 %v216, %v216
    %v226 = vpack.c.bf16 %v210, %v210
    %v234 = vunpack.c.l.b16 %v220
    %v235 = vunpack.c.l.b16 %v221
    %v236 = vunpack.c.l.b16 %v222
    %v237 = vunpack.c.l.b16 %v223
    %v238 = vunpack.c.l.b16 %v224
    %v239 = vunpack.c.l.b16 %v225
    %v240 = vunpack.c.l.b16 %v226
    %v241 = vpack.c.b16 %v235, %v234
    %v242 = vpack.c.b16 %v237, %v236
    %v243 = vpack.c.b16 %v239, %v238
    %v244 = vpack.c.b16 %v240, %v240
    %v245 = vrot.slane %v241, 6
    %v246 = vrot.slane %v242, 6
    %v247 = vrot.slane %v243, 6
    %v248 = vrot.slane %v244, 6
    %249 = vrot.lane.b32.xlu0 %v245, 110
    %v250 = vpop.permute.xlu0 %249
    %251 = vrot.lane.b32.xlu0 %v246, 110
    %v252 = vpop.permute.xlu0 %251
    %253 = vrot.lane.b32.xlu0 %v247, 110
    %v254 = vpop.permute.xlu0 %253
    %255 = vrot.lane.b32.xlu0 %v248, 110
    %v256 = vpop.permute.xlu0 %255
    %v257 = vrot.slane %v250, 4
    %v258 = vrot.slane %v252, 4
    %v259 = vrot.slane %v254, 4
    %v260 = vrot.slane %v256, 4
    %v261 = vsel %vm130, %v257, %v258
    %vm262 = vcmask 900096
    %v263 = vsel %vm262, %v250, %v261
    %v264 = vsel %vm130, %v258, %v259
    %v265 = vsel %vm262, %v252, %v264
    %v266 = vsel %vm130, %v259, %v260
    %v267 = vsel %vm262, %v254, %v266
    %271 = vst [vmem:[#allocation2 + $0x18] sm:$0xcc] %v263
    %272 = vst [vmem:[#allocation2 + $0x20] sm:$0xcc] %v265
    %273 = vst [vmem:[#allocation2 + $0x28] sm:$0xcc] %v267
    %v274 = vld [vmem:[#allocation5] sm:$0xff]
    %v275 = vld [vmem:[#allocation5 + $0x8] sm:$0xff]
    %v276 = vld [vmem:[#allocation5 + $0x10] sm:$0xff]
    %v277 = vld [vmem:[#allocation5 + $0x18] sm:$0xf]
    %v281 = vcombine.high %v274, %v274
    %v282 = vcombine.high %v275, %v275
    %v283 = vcombine.high %v276, %v276
    %v287 = vpack.c.bf16 %v274, %v274
    %v288 = vpack.c.bf16 %v281, %v281
    %v289 = vpack.c.bf16 %v275, %v275
    %v290 = vpack.c.bf16 %v282, %v282
    %v291 = vpack.c.bf16 %v276, %v276
    %v292 = vpack.c.bf16 %v283, %v283
    %v293 = vpack.c.bf16 %v277, %v277
    %v301 = vunpack.c.l.b16 %v287
    %v302 = vunpack.c.l.b16 %v288
    %v303 = vunpack.c.l.b16 %v289
    %v304 = vunpack.c.l.b16 %v290
    %v305 = vunpack.c.l.b16 %v291
    %v306 = vunpack.c.l.b16 %v292
    %v307 = vunpack.c.l.b16 %v293
    %v308 = vpack.c.b16 %v302, %v301
    %v309 = vpack.c.b16 %v304, %v303
    %v310 = vpack.c.b16 %v306, %v305
    %v311 = vpack.c.b16 %v307, %v307
    %312 = vrot.lane.b32.xlu0 %v308, 109
    %v313 = vpop.permute.xlu0 %312
    %314 = vrot.lane.b32.xlu0 %v309, 109
    %v315 = vpop.permute.xlu0 %314
    %316 = vrot.lane.b32.xlu0 %v310, 109
    %v317 = vpop.permute.xlu0 %316
    %318 = vrot.lane.b32.xlu0 %v311, 109
    %v319 = vpop.permute.xlu0 %318
    %v320 = vrot.slane %v313, 4
    %v321 = vrot.slane %v315, 4
    %v322 = vrot.slane %v317, 4
    %v323 = vrot.slane %v319, 4
    %v324 = vsel %vm130, %v320, %v321
    %vm325 = vcmask 891904
    %v326 = vsel %vm325, %v313, %v324
    %v327 = vsel %vm130, %v321, %v322
    %v328 = vsel %vm325, %v315, %v327
    %v329 = vsel %vm130, %v322, %v323
    %v330 = vsel %vm325, %v317, %v329
    %334 = vst [vmem:[#allocation2 + $0x30] sm:$0x33] %v326
    %335 = vst [vmem:[#allocation2 + $0x38] sm:$0x33] %v328
    %336 = vst [vmem:[#allocation2 + $0x40] sm:$0x33] %v330
    %v337 = vld [vmem:[#allocation5] sm:$0xff]
    %v338 = vld [vmem:[#allocation5 + $0x8] sm:$0xff]
    %v339 = vld [vmem:[#allocation5 + $0x10] sm:$0xff]
    %v340 = vld [vmem:[#allocation5 + $0x18] sm:$0xf]
    %v344 = vcombine.high %v337, %v337
    %v345 = vcombine.high %v338, %v338
    %v346 = vcombine.high %v339, %v339
    %v350 = vpack.c.bf16 %v337, %v337
    %v351 = vpack.c.bf16 %v344, %v344
    %v352 = vpack.c.bf16 %v338, %v338
    %v353 = vpack.c.bf16 %v345, %v345
    %v354 = vpack.c.bf16 %v339, %v339
    %v355 = vpack.c.bf16 %v346, %v346
    %v356 = vpack.c.bf16 %v340, %v340
    %v364 = vunpack.c.l.b16 %v350
    %v365 = vunpack.c.l.b16 %v351
    %v366 = vunpack.c.l.b16 %v352
    %v367 = vunpack.c.l.b16 %v353
    %v368 = vunpack.c.l.b16 %v354
    %v369 = vunpack.c.l.b16 %v355
    %v370 = vunpack.c.l.b16 %v356
    %v371 = vpack.c.b16 %v365, %v364
    %v372 = vpack.c.b16 %v367, %v366
    %v373 = vpack.c.b16 %v369, %v368
    %v374 = vpack.c.b16 %v370, %v370
    %v375 = vrot.slane %v371, 6
    %v376 = vrot.slane %v372, 6
    %v377 = vrot.slane %v373, 6
    %v378 = vrot.slane %v374, 6
    %379 = vrot.lane.b32.xlu0 %v375, 108
    %v380 = vpop.permute.xlu0 %379
    %381 = vrot.lane.b32.xlu0 %v376, 108
    %v382 = vpop.permute.xlu0 %381
    %383 = vrot.lane.b32.xlu0 %v377, 108
    %v384 = vpop.permute.xlu0 %383
    %385 = vrot.lane.b32.xlu0 %v378, 108
    %v386 = vpop.permute.xlu0 %385
    %v387 = vrot.slane %v380, 4
    %v388 = vrot.slane %v382, 4
    %v389 = vrot.slane %v384, 4
    %v390 = vrot.slane %v386, 4
    %v391 = vsel %vm130, %v387, %v388
    %vm392 = vcmask 883712
    %v393 = vsel %vm392, %v380, %v391
    %v394 = vsel %vm130, %v388, %v389
    %v395 = vsel %vm392, %v382, %v394
    %v396 = vsel %vm130, %v389, %v390
    %v397 = vsel %vm392, %v384, %v396
    %401 = vst [vmem:[#allocation2 + $0x30] sm:$0xcc] %v393
    %402 = vst [vmem:[#allocation2 + $0x38] sm:$0xcc] %v395
    %403 = vst [vmem:[#allocation2 + $0x40] sm:$0xcc] %v397
    %v404 = vld [vmem:[#allocation5] sm:$0xff]
    %v405 = vld [vmem:[#allocation5 + $0x8] sm:$0xff]
    %v406 = vld [vmem:[#allocation5 + $0x10] sm:$0xff]
    %v407 = vld [vmem:[#allocation5 + $0x18] sm:$0xf]
    %v411 = vcombine.high %v404, %v404
    %v412 = vcombine.high %v405, %v405
    %v413 = vcombine.high %v406, %v406
    %v417 = vpack.c.bf16 %v404, %v404
    %v418 = vpack.c.bf16 %v411, %v411
    %v419 = vpack.c.bf16 %v405, %v405
    %v420 = vpack.c.bf16 %v412, %v412
    %v421 = vpack.c.bf16 %v406, %v406
    %v422 = vpack.c.bf16 %v413, %v413
    %v423 = vpack.c.bf16 %v407, %v407
    %v431 = vunpack.c.l.b16 %v417
    %v432 = vunpack.c.l.b16 %v418
    %v433 = vunpack.c.l.b16 %v419
    %v434 = vunpack.c.l.b16 %v420
    %v435 = vunpack.c.l.b16 %v421
    %v436 = vunpack.c.l.b16 %v422
    %v437 = vunpack.c.l.b16 %v423
    %v438 = vpack.c.b16 %v432, %v431
    %v439 = vpack.c.b16 %v434, %v433
    %v440 = vpack.c.b16 %v436, %v435
    %v441 = vpack.c.b16 %v437, %v437
    %442 = vrot.lane.b32.xlu0 %v438, 92
    %v443 = vpop.permute.xlu0 %442
    %444 = vrot.lane.b32.xlu0 %v439, 92
    %v445 = vpop.permute.xlu0 %444
    %446 = vrot.lane.b32.xlu0 %v440, 92
    %v447 = vpop.permute.xlu0 %446
    %448 = vrot.lane.b32.xlu0 %v441, 92
    %v449 = vpop.permute.xlu0 %448
    %v450 = vrot.slane %v443, 4
    %v451 = vrot.slane %v445, 4
    %v452 = vrot.slane %v447, 4
    %v453 = vrot.slane %v449, 4
    %v454 = vsel %vm130, %v450, %v451
    %vm455 = vcmask 752640
    %v456 = vsel %vm455, %v443, %v454
    %v457 = vsel %vm130, %v451, %v452
    %v458 = vsel %vm455, %v445, %v457
    %v459 = vsel %vm130, %v452, %v453
    %v460 = vsel %vm455, %v447, %v459
    %464 = vst [vmem:[#allocation2 + $0x48] sm:$0x33] %v456
    %465 = vst [vmem:[#allocation2 + $0x50] sm:$0x33] %v458
    %466 = vst [vmem:[#allocation2 + $0x58] sm:$0x33] %v460
    %v467 = vld [vmem:[#allocation5] sm:$0xff]
    %v468 = vld [vmem:[#allocation5 + $0x8] sm:$0xff]
    %v469 = vld [vmem:[#allocation5 + $0x10] sm:$0xff]
    %v470 = vld [vmem:[#allocation5 + $0x18] sm:$0xf]
    %v474 = vcombine.high %v467, %v467
    %v475 = vcombine.high %v468, %v468
    %v476 = vcombine.high %v469, %v469
    %v480 = vpack.c.bf16 %v467, %v467
    %v481 = vpack.c.bf16 %v474, %v474
    %v482 = vpack.c.bf16 %v468, %v468
    %v483 = vpack.c.bf16 %v475, %v475
    %v484 = vpack.c.bf16 %v469, %v469
    %v485 = vpack.c.bf16 %v476, %v476
    %v486 = vpack.c.bf16 %v470, %v470
    %v494 = vunpack.c.l.b16 %v480
    %v495 = vunpack.c.l.b16 %v481
    %v496 = vunpack.c.l.b16 %v482
    %v497 = vunpack.c.l.b16 %v483
    %v498 = vunpack.c.l.b16 %v484
    %v499 = vunpack.c.l.b16 %v485
    %v500 = vunpack.c.l.b16 %v486
    %v501 = vpack.c.b16 %v495, %v494
    %v502 = vpack.c.b16 %v497, %v496
    %v503 = vpack.c.b16 %v499, %v498
    %v504 = vpack.c.b16 %v500, %v500
    %v505 = vrot.slane %v501, 6
    %v506 = vrot.slane %v502, 6
    %v507 = vrot.slane %v503, 6
    %v508 = vrot.slane %v504, 6
    %509 = vrot.lane.b32.xlu0 %v505, 91
    %v510 = vpop.permute.xlu0 %509
    %511 = vrot.lane.b32.xlu0 %v506, 91
    %v512 = vpop.permute.xlu0 %511
    %513 = vrot.lane.b32.xlu0 %v507, 91
    %v514 = vpop.permute.xlu0 %513
    %515 = vrot.lane.b32.xlu0 %v508, 91
    %v516 = vpop.permute.xlu0 %515
    %v517 = vrot.slane %v510, 4
    %v518 = vrot.slane %v512, 4
    %v519 = vrot.slane %v514, 4
    %v520 = vrot.slane %v516, 4
    %v521 = vsel %vm130, %v517, %v518
    %vm522 = vcmask 744448
    %v523 = vsel %vm522, %v510, %v521
    %v524 = vsel %vm130, %v518, %v519
    %v525 = vsel %vm522, %v512, %v524
    %v526 = vsel %vm130, %v519, %v520
    %v527 = vsel %vm522, %v514, %v526
    %531 = vst [vmem:[#allocation2 + $0x48] sm:$0xcc] %v523
    %532 = vst [vmem:[#allocation2 + $0x50] sm:$0xcc] %v525
    %533 = vst [vmem:[#allocation2 + $0x58] sm:$0xcc] %v527
    %v534 = vld [vmem:[#allocation5] sm:$0xff]
    %v535 = vld [vmem:[#allocation5 + $0x8] sm:$0xff]
    %v536 = vld [vmem:[#allocation5 + $0x10] sm:$0xff]
    %v537 = vld [vmem:[#allocation5 + $0x18] sm:$0xf]
    %v541 = vcombine.high %v534, %v534
    %v542 = vcombine.high %v535, %v535
    %v543 = vcombine.high %v536, %v536
    %v547 = vpack.c.bf16 %v534, %v534
    %v548 = vpack.c.bf16 %v541, %v541
    %v549 = vpack.c.bf16 %v535, %v535
    %v550 = vpack.c.bf16 %v542, %v542
    %v551 = vpack.c.bf16 %v536, %v536
    %v552 = vpack.c.bf16 %v543, %v543
    %v553 = vpack.c.bf16 %v537, %v537
    %v561 = vunpack.c.l.b16 %v547
    %v562 = vunpack.c.l.b16 %v548
    %v563 = vunpack.c.l.b16 %v549
    %v564 = vunpack.c.l.b16 %v550
    %v565 = vunpack.c.l.b16 %v551
    %v566 = vunpack.c.l.b16 %v552
    %v567 = vunpack.c.l.b16 %v553
    %v568 = vpack.c.b16 %v562, %v561
    %v569 = vpack.c.b16 %v564, %v563
    %v570 = vpack.c.b16 %v566, %v565
    %v571 = vpack.c.b16 %v567, %v567
    %572 = vrot.lane.b32.xlu0 %v568, 90
    %v573 = vpop.permute.xlu0 %572
    %574 = vrot.lane.b32.xlu0 %v569, 90
    %v575 = vpop.permute.xlu0 %574
    %576 = vrot.lane.b32.xlu0 %v570, 90
    %v577 = vpop.permute.xlu0 %576
    %578 = vrot.lane.b32.xlu0 %v571, 90
    %v579 = vpop.permute.xlu0 %578
    %v580 = vrot.slane %v573, 4
    %v581 = vrot.slane %v575, 4
    %v582 = vrot.slane %v577, 4
    %v583 = vrot.slane %v579, 4
    %v584 = vsel %vm130, %v580, %v581
    %vm585 = vcmask 736256
    %v586 = vsel %vm585, %v573, %v584
    %v587 = vsel %vm130, %v581, %v582
    %v588 = vsel %vm585, %v575, %v587
    %v589 = vsel %vm130, %v582, %v583
    %v590 = vsel %vm585, %v577, %v589
    %594 = vst [vmem:[#allocation2 + $0x60] sm:$0x33] %v586
    %595 = vst [vmem:[#allocation2 + $0x68] sm:$0x33] %v588
    %596 = vst [vmem:[#allocation2 + $0x70] sm:$0x33] %v590
    %v597 = vld [vmem:[%s1] sm:$0xf]
    %v598 = vld [vmem:[#allocation2] sm:$0xff]
    %v599 = vld [vmem:[#allocation2 + $0x8] sm:$0xff]
    %v600 = vld [vmem:[#allocation2 + $0x10] sm:$0xff]
    %v601 = vld [vmem:[#allocation2 + $0x18] sm:$0xff]
    %v602 = vld [vmem:[#allocation2 + $0x20] sm:$0xff]
    %v603 = vld [vmem:[#allocation2 + $0x28] sm:$0xff]
    %v604 = vld [vmem:[#allocation2 + $0x30] sm:$0xff]
    %v605 = vld [vmem:[#allocation2 + $0x38] sm:$0xff]
    %v606 = vld [vmem:[#allocation2 + $0x40] sm:$0xff]
    %v607 = vld [vmem:[#allocation2 + $0x48] sm:$0xff]
    %v608 = vld [vmem:[#allocation2 + $0x50] sm:$0xff]
    %v609 = vld [vmem:[#allocation2 + $0x58] sm:$0xff]
    %v610 = vld [vmem:[#allocation2 + $0x60] sm:$0x33]
    %v611 = vld [vmem:[#allocation2 + $0x68] sm:$0x33]
    %v612 = vld [vmem:[#allocation2 + $0x70] sm:$0x33]
    %v613 = vld [vmem:[%s2] sm:$0xff]
    %615 = vset.pattern.permute.xlu0 0
    %616 = vperm.xlu0 %615, %v613
    %v617 = vpop.permute.xlu0 %616
    %v634 = vunpack.c.l.b16 %v598
    %v635 = vunpack.c.h.b16 %v598
    %v636 = vunpack.c.l.b16 %v599
    %v637 = vunpack.c.h.b16 %v599
    %v638 = vunpack.c.l.b16 %v600
    %v639 = vunpack.c.h.b16 %v600
    %v640 = vunpack.c.l.b16 %v601
    %v641 = vunpack.c.h.b16 %v601
    %v642 = vunpack.c.l.b16 %v602
    %v643 = vunpack.c.h.b16 %v602
    %v644 = vunpack.c.l.b16 %v603
    %v645 = vunpack.c.h.b16 %v603
    %v646 = vunpack.c.l.b16 %v604
    %v647 = vunpack.c.h.b16 %v604
    %v648 = vunpack.c.l.b16 %v605
    %v649 = vunpack.c.h.b16 %v605
    %v650 = vunpack.c.l.b16 %v606
    %v651 = vunpack.c.h.b16 %v606
    %v652 = vunpack.c.l.b16 %v607
    %v653 = vunpack.c.h.b16 %v607
    %v654 = vunpack.c.l.b16 %v608
    %v655 = vunpack.c.h.b16 %v608
    %v656 = vunpack.c.l.b16 %v609
    %v657 = vunpack.c.h.b16 %v609
    %v658 = vunpack.c.l.b16 %v610
    %v659 = vunpack.c.h.b16 %v610
    %v660 = vunpack.c.l.b16 %v611
    %v661 = vunpack.c.h.b16 %v611
    %v662 = vunpack.c.l.b16 %v612
    %v663 = vunpack.c.h.b16 %v612
    %v664 = vpack.c.b16 %v640, %v634
    %v665 = vpack.c.b16 %v641, %v635
    %v666 = vpack.c.b16 %v642, %v636
    %v667 = vpack.c.b16 %v643, %v637
    %v668 = vpack.c.b16 %v644, %v638
    %v669 = vpack.c.b16 %v645, %v639
    %v670 = vpack.c.b16 %v652, %v646
    %v671 = vpack.c.b16 %v653, %v647
    %v672 = vpack.c.b16 %v654, %v648
    %v673 = vpack.c.b16 %v655, %v649
    %v674 = vpack.c.b16 %v656, %v650
    %v675 = vpack.c.b16 %v657, %v651
    %v676 = vpack.c.b16 %v658, %v658
    %v677 = vpack.c.b16 %v659, %v659
    %v678 = vpack.c.b16 %v660, %v660
    %v679 = vpack.c.b16 %v661, %v661
    %v680 = vpack.c.b16 %v662, %v662
    %v681 = vpack.c.b16 %v663, %v663
    %vm694 = vcmask 293888
    %v696 = vsel %vm694, %v597, 0
    %vm698 = vcmask 1041408
    %v700 = vsel %vm698, %v676, 0
    %v703 = vsel %vm698, %v677, 0
    %v706 = vsel %vm698, %v678, 0
    %v709 = vsel %vm698, %v679, 0
    %v712 = vsel %vm698, %v680, 0
    %v715 = vsel %vm698, %v681, 0
    %717 = vmatprep.subr.bf16.mxu0 %v665
    %718 = vmatpush1.bf16.msra.mxu0 %v664
    %719 = vmatprep.subr.bf16.mxu0 %v671
    %720 = vmatpush1.bf16.msra.mxu0 %v670
    %721 = vmatprep.subr.bf16.mxu0 %v703
    %722 = vmatpush1.bf16.msra.mxu0 %v700
    %723 = vmatprep.subr.bf16.mxu0 0
    %724 = vmatpush1.bf16.msra.mxu0 0
    %725 = vmatprep.subr.bf16.mxu0 0
    %726 = vmatpush1.bf16.msra.mxu0 0
    %727 = vmatprep.subr.bf16.mxu0 0
    %728 = vmatpush1.bf16.msra.mxu0 0
    %729 = vmatprep.subr.bf16.mxu0 0
    %730 = vmatpush1.bf16.msra.mxu0 0
    %731 = vmatprep.subr.bf16.mxu0 0
    %732 = vmatpush1.bf16.msra.mxu0 0
    %733 = vmatprep.subr.bf16.mxu0 0
    %734 = vmatpush1.bf16.msra.mxu0 0
    %735 = vmatprep.subr.bf16.mxu0 0
    %736 = vmatpush1.bf16.msra.mxu0 0
    %737 = vmatprep.subr.bf16.mxu0 0
    %738 = vmatpush1.bf16.msra.mxu0 0
    %739 = vmatprep.subr.bf16.mxu0 0
    %740 = vmatpush1.bf16.msra.mxu0 0
    %741 = vmatprep.subr.bf16.mxu0 0
    %742 = vmatpush1.bf16.msra.mxu0 0
    %743 = vmatprep.subr.bf16.mxu0 0
    %744 = vmatpush1.bf16.msra.mxu0 0
    %745 = vmatprep.subr.bf16.mxu0 0
    %746 = vmatpush1.bf16.msra.mxu0 0
    %747 = vmatprep.subr.bf16.mxu0 0
    %748 = vmatpush1.bf16.msra.mxu0 0
    %749 = vmatprep.mubr.bf16.mxu0 0
    %750 = vmatmul.mubr.bf16.gmra.mrb[0].mxu0 %v696
    %v751 = vpop.f32.mrb[0].mxu0
    %v752 = vadd.f32 %v617, %v751
    %v753 = vpop.f32.mrb[0].mxu0
    %v754 = vadd.f32 %v617, %v753
    %v755 = vpop.f32.mrb[0].mxu0
    %v756 = vpop.f32.mrb[0].mxu0
    %757 = vdwg.mxu0
    %758 = vmatprep.subr.bf16.mxu0 %v667
    %759 = vmatpush1.bf16.msra.mxu0 %v666
    %760 = vmatprep.subr.bf16.mxu0 %v673
    %761 = vmatpush1.bf16.msra.mxu0 %v672
    %762 = vmatprep.subr.bf16.mxu0 %v709
    %763 = vmatpush1.bf16.msra.mxu0 %v706
    %764 = vmatprep.subr.bf16.mxu0 0
    %765 = vmatpush1.bf16.msra.mxu0 0
    %766 = vmatprep.subr.bf16.mxu0 0
    %767 = vmatpush1.bf16.msra.mxu0 0
    %768 = vmatprep.subr.bf16.mxu0 0
    %769 = vmatpush1.bf16.msra.mxu0 0
    %770 = vmatprep.subr.bf16.mxu0 0
    %771 = vmatpush1.bf16.msra.mxu0 0
    %772 = vmatprep.subr.bf16.mxu0 0
    %773 = vmatpush1.bf16.msra.mxu0 0
    %774 = vmatprep.subr.bf16.mxu0 0
    %775 = vmatpush1.bf16.msra.mxu0 0
    %776 = vmatprep.subr.bf16.mxu0 0
    %777 = vmatpush1.bf16.msra.mxu0 0
    %778 = vmatprep.subr.bf16.mxu0 0
    %779 = vmatpush1.bf16.msra.mxu0 0
    %780 = vmatprep.subr.bf16.mxu0 0
    %781 = vmatpush1.bf16.msra.mxu0 0
    %782 = vmatprep.subr.bf16.mxu0 0
    %783 = vmatpush1.bf16.msra.mxu0 0
    %784 = vmatprep.subr.bf16.mxu0 0
    %785 = vmatpush1.bf16.msra.mxu0 0
    %786 = vmatprep.subr.bf16.mxu0 0
    %787 = vmatpush1.bf16.msra.mxu0 0
    %788 = vmatprep.subr.bf16.mxu0 0
    %789 = vmatpush1.bf16.msra.mxu0 0
    %790 = vmatprep.mubr.bf16.mxu0 0
    %791 = vmatmul.mubr.bf16.gmra.mrb[0].mxu0 %v696
    %v792 = vpop.f32.mrb[0].mxu0
    %v793 = vadd.f32 %v617, %v792
    %v794 = vpop.f32.mrb[0].mxu0
    %v795 = vadd.f32 %v617, %v794
    %v796 = vpop.f32.mrb[0].mxu0
    %v797 = vpop.f32.mrb[0].mxu0
    %798 = vdwg.mxu0
    %799 = vmatprep.subr.bf16.mxu0 %v669
    %800 = vmatpush1.bf16.msra.mxu0 %v668
    %801 = vmatprep.subr.bf16.mxu0 %v675
    %802 = vmatpush1.bf16.msra.mxu0 %v674
    %803 = vmatprep.subr.bf16.mxu0 %v715
    %804 = vmatpush1.bf16.msra.mxu0 %v712
    %805 = vmatprep.subr.bf16.mxu0 0
    %806 = vmatpush1.bf16.msra.mxu0 0
    %807 = vmatprep.subr.bf16.mxu0 0
    %808 = vmatpush1.bf16.msra.mxu0 0
    %809 = vmatprep.subr.bf16.mxu0 0
    %810 = vmatpush1.bf16.msra.mxu0 0
    %811 = vmatprep.subr.bf16.mxu0 0
    %812 = vmatpush1.bf16.msra.mxu0 0
    %813 = vmatprep.subr.bf16.mxu0 0
    %814 = vmatpush1.bf16.msra.mxu0 0
    %815 = vmatprep.subr.bf16.mxu0 0
    %816 = vmatpush1.bf16.msra.mxu0 0
    %817 = vmatprep.subr.bf16.mxu0 0
    %818 = vmatpush1.bf16.msra.mxu0 0
    %819 = vmatprep.subr.bf16.mxu0 0
    %820 = vmatpush1.bf16.msra.mxu0 0
    %821 = vmatprep.subr.bf16.mxu0 0
    %822 = vmatpush1.bf16.msra.mxu0 0
    %823 = vmatprep.subr.bf16.mxu0 0
    %824 = vmatpush1.bf16.msra.mxu0 0
    %825 = vmatprep.subr.bf16.mxu0 0
    %826 = vmatpush1.bf16.msra.mxu0 0
    %827 = vmatprep.subr.bf16.mxu0 0
    %828 = vmatpush1.bf16.msra.mxu0 0
    %829 = vmatprep.subr.bf16.mxu0 0
    %830 = vmatpush1.bf16.msra.mxu0 0
    %831 = vmatprep.mubr.bf16.mxu0 0
    %832 = vmatmul.mubr.bf16.gmra.mrb[0].mxu0 %v696
    %v833 = vpop.f32.mrb[0].mxu0
    %v834 = vadd.f32 %v617, %v833
    %v835 = vpop.f32.mrb[0].mxu0
    %v836 = vadd.f32 %v617, %v835
    %v837 = vpop.f32.mrb[0].mxu0
    %v838 = vpop.f32.mrb[0].mxu0
    %839 = vdwg.mxu0
    %v840 = vmax.f32 %v752, 0.0
    %v841 = vmax.f32 %v754, 0.0
    %v842 = vmax.f32 %v793, 0.0
    %v843 = vmax.f32 %v795, 0.0
    %v844 = vmax.f32 %v834, 0.0
    %v845 = vmax.f32 %v836, 0.0
    %v846 = vld [vmem:[%s5] sm:$0x3f]
    %v848 = vlaneseq
    %v849 = vshrl.u32 %v848, 7
    %v850 = vsub.s32 0, %v849
    %v851 = vrot.slane %v846, %v850
    %v852 = vlaneseq
    %v853 = vshrl.u32 %v852, 7
    %v854 = vsub.s32 1, %v853
    %v855 = vrot.slane %v846, %v854
    %v856 = vlaneseq
    %v857 = vshrl.u32 %v856, 7
    %v858 = vsub.s32 2, %v857
    %v859 = vrot.slane %v846, %v858
    %v860 = vlaneseq
    %v861 = vshrl.u32 %v860, 7
    %v862 = vsub.s32 3, %v861
    %v863 = vrot.slane %v846, %v862
    %v864 = vlaneseq
    %v865 = vshrl.u32 %v864, 7
    %v866 = vsub.s32 4, %v865
    %v867 = vrot.slane %v846, %v866
    %v868 = vlaneseq
    %v869 = vshrl.u32 %v868, 7
    %v870 = vsub.s32 5, %v869
    %v871 = vrot.slane %v846, %v870
    %v878 = vmul.f32 %v840, %v851
    %v879 = vmul.f32 %v841, %v855
    %v880 = vmul.f32 %v842, %v859
    %v881 = vmul.f32 %v843, %v863
    %v882 = vmul.f32 %v844, %v867
    %v883 = vmul.f32 %v845, %v871
    %884 = vst [vmem:[#allocation3] sm:$0xff] 0.0
    %885 = vst [vmem:[#allocation3 + $0x8] sm:$0xff] 0.0
    %886 = vst [vmem:[#allocation3 + $0x10] sm:$0xff] 0.0
    %887 = vst [vmem:[#allocation3 + $0x18] sm:$0xff] 0.0
    %888 = vst [vmem:[#allocation3 + $0x20] sm:$0xff] 0.0
    %889 = vst [vmem:[#allocation3 + $0x28] sm:$0xff] 0.0
    %890 = vst [vmem:[#allocation3 + $0x30] sm:$0xff] 0.0
    %897 = vrot.lane.b32.xlu0 %v878, 19
    %v898 = vpop.permute.xlu0 %897
    %899 = vrot.lane.b32.xlu0 %v879, 19
    %v900 = vpop.permute.xlu0 %899
    %901 = vrot.lane.b32.xlu0 %v880, 19
    %v902 = vpop.permute.xlu0 %901
    %903 = vrot.lane.b32.xlu0 %v881, 19
    %v904 = vpop.permute.xlu0 %903
    %905 = vrot.lane.b32.xlu0 %v882, 19
    %v906 = vpop.permute.xlu0 %905
    %907 = vrot.lane.b32.xlu0 %v883, 19
    %v908 = vpop.permute.xlu0 %907
    %vm909 = vcmask 154624
    %v910 = vsel %vm909, %v898, %v900
    %v911 = vsel %vm909, %v900, %v902
    %v912 = vsel %vm909, %v902, %v904
    %v913 = vsel %vm909, %v904, %v906
    %v914 = vsel %vm909, %v906, %v908
    %vm922 = vcmask 1047704
    %923 = vst.msk [vmem:[#allocation3] sm:$0xff] %vm922, %v898
    %924 = vst [vmem:[#allocation3 + $0x8] sm:$0xff] %v910
    %925 = vst [vmem:[#allocation3 + $0x10] sm:$0xff] %v911
    %926 = vst [vmem:[#allocation3 + $0x18] sm:$0xff] %v912
    %927 = vst [vmem:[#allocation3 + $0x20] sm:$0xff] %v913
    %928 = vst [vmem:[#allocation3 + $0x28] sm:$0xff] %v914
    %929 = vst.msk [vmem:[#allocation3 + $0x30] sm:$0xff] %vm909, %v908
    %v930 = vld [vmem:[#allocation3] sm:$0xff]
    %v931 = vld [vmem:[#allocation3 + $0x8] sm:$0xff]
    %v932 = vld [vmem:[#allocation3 + $0x10] sm:$0xff]
    %v933 = vld [vmem:[#allocation3 + $0x18] sm:$0xff]
    %v934 = vld [vmem:[#allocation3 + $0x20] sm:$0xff]
    %v935 = vld [vmem:[#allocation3 + $0x28] sm:$0xff]
    %v936 = vpack.c.bf16 %v930, %v930
    %v937 = vpack.c.bf16 %v931, %v931
    %v938 = vpack.c.bf16 %v932, %v932
    %v939 = vpack.c.bf16 %v933, %v933
    %v940 = vpack.c.bf16 %v934, %v934
    %v941 = vpack.c.bf16 %v935, %v935
    %v948 = vunpack.c.l.b16 %v936
    %v949 = vunpack.c.l.b16 %v937
    %v950 = vunpack.c.l.b16 %v938
    %v951 = vunpack.c.l.b16 %v939
    %v952 = vunpack.c.l.b16 %v940
    %v953 = vunpack.c.l.b16 %v941
    %v954 = vpack.c.b16 %v949, %v948
    %v955 = vpack.c.b16 %v951, %v950
    %v956 = vpack.c.b16 %v953, %v952
    %960 = vst [vmem:[#allocation4] sm:$0xff] %v954
    %961 = vst [vmem:[#allocation4 + $0x8] sm:$0xff] %v955
    %962 = vst [vmem:[#allocation4 + $0x10] sm:$0xff] %v956
    %v963 = vld [vmem:[#allocation3] sm:$0xff]
    %v964 = vld [vmem:[#allocation3 + $0x8] sm:$0xff]
    %v965 = vld [vmem:[#allocation3 + $0x10] sm:$0xff]
    %v966 = vld [vmem:[#allocation3 + $0x18] sm:$0xff]
    %v967 = vld [vmem:[#allocation3 + $0x20] sm:$0xff]
    %v968 = vld [vmem:[#allocation3 + $0x28] sm:$0xff]
    %v969 = vld [vmem:[#allocation3 + $0x30] sm:$0xff]
    %v970 = vpack.c.bf16 %v963, %v963
    %v971 = vpack.c.bf16 %v964, %v964
    %v972 = vpack.c.bf16 %v965, %v965
    %v973 = vpack.c.bf16 %v966, %v966
    %v974 = vpack.c.bf16 %v967, %v967
    %v975 = vpack.c.bf16 %v968, %v968
    %v976 = vpack.c.bf16 %v969, %v969
    %v984 = vunpack.c.l.b16 %v970
    %v985 = vunpack.c.l.b16 %v971
    %v986 = vunpack.c.l.b16 %v972
    %v987 = vunpack.c.l.b16 %v973
    %v988 = vunpack.c.l.b16 %v974
    %v989 = vunpack.c.l.b16 %v975
    %v990 = vunpack.c.l.b16 %v976
    %v991 = vpack.c.b16 %v985, %v984
    %v992 = vpack.c.b16 %v987, %v986
    %v993 = vpack.c.b16 %v989, %v988
    %v994 = vpack.c.b16 %v990, %v990
    %995 = vrot.lane.b32.xlu0 %v991, 127
    %v996 = vpop.permute.xlu0 %995
    %997 = vrot.lane.b32.xlu0 %v992, 127
    %v998 = vpop.permute.xlu0 %997
    %999 = vrot.lane.b32.xlu0 %v993, 127
    %v1000 = vpop.permute.xlu0 %999
    %1001 = vrot.lane.b32.xlu0 %v994, 127
    %v1002 = vpop.permute.xlu0 %1001
    %v1003 = vrot.slane %v996, 4
    %v1004 = vrot.slane %v998, 4
    %v1005 = vrot.slane %v1000, 4
    %v1006 = vrot.slane %v1002, 4
    %v1007 = vsel %vm130, %v1003, %v1004
    %v1008 = vsel %vm132, %v996, %v1007
    %v1009 = vsel %vm130, %v1004, %v1005
    %v1010 = vsel %vm132, %v998, %v1009
    %v1011 = vsel %vm130, %v1005, %v1006
    %v1012 = vsel %vm132, %v1000, %v1011
    %1016 = vst [vmem:[#allocation4 + $0x18] sm:$0xff] %v1008
    %1017 = vst [vmem:[#allocation4 + $0x20] sm:$0xff] %v1010
    %1018 = vst [vmem:[#allocation4 + $0x28] sm:$0xff] %v1012
    %v1019 = vld [vmem:[#allocation3] sm:$0xff]
    %v1020 = vld [vmem:[#allocation3 + $0x8] sm:$0xff]
    %v1021 = vld [vmem:[#allocation3 + $0x10] sm:$0xff]
    %v1022 = vld [vmem:[#allocation3 + $0x18] sm:$0xff]
    %v1023 = vld [vmem:[#allocation3 + $0x20] sm:$0xff]
    %v1024 = vld [vmem:[#allocation3 + $0x28] sm:$0xff]
    %v1025 = vld [vmem:[#allocation3 + $0x30] sm:$0xff]
    %v1026 = vpack.c.bf16 %v1019, %v1019
    %v1027 = vpack.c.bf16 %v1020, %v1020
    %v1028 = vpack.c.bf16 %v1021, %v1021
    %v1029 = vpack.c.bf16 %v1022, %v1022
    %v1030 = vpack.c.bf16 %v1023, %v1023
    %v1031 = vpack.c.bf16 %v1024, %v1024
    %v1032 = vpack.c.bf16 %v1025, %v1025
    %v1040 = vunpack.c.l.b16 %v1026
    %v1041 = vunpack.c.l.b16 %v1027
    %v1042 = vunpack.c.l.b16 %v1028
    %v1043 = vunpack.c.l.b16 %v1029
    %v1044 = vunpack.c.l.b16 %v1030
    %v1045 = vunpack.c.l.b16 %v1031
    %v1046 = vunpack.c.l.b16 %v1032
    %v1047 = vpack.c.b16 %v1041, %v1040
    %v1048 = vpack.c.b16 %v1043, %v1042
    %v1049 = vpack.c.b16 %v1045, %v1044
    %v1050 = vpack.c.b16 %v1046, %v1046
    %1051 = vrot.lane.b32.xlu0 %v1047, 126
    %v1052 = vpop.permute.xlu0 %1051
    %1053 = vrot.lane.b32.xlu0 %v1048, 126
    %v1054 = vpop.permute.xlu0 %1053
    %1055 = vrot.lane.b32.xlu0 %v1049, 126
    %v1056 = vpop.permute.xlu0 %1055
    %1057 = vrot.lane.b32.xlu0 %v1050, 126
    %v1058 = vpop.permute.xlu0 %1057
    %v1059 = vrot.slane %v1052, 4
    %v1060 = vrot.slane %v1054, 4
    %v1061 = vrot.slane %v1056, 4
    %v1062 = vrot.slane %v1058, 4
    %v1063 = vsel %vm130, %v1059, %v1060
    %v1064 = vsel %vm195, %v1052, %v1063
    %v1065 = vsel %vm130, %v1060, %v1061
    %v1066 = vsel %vm195, %v1054, %v1065
    %v1067 = vsel %vm130, %v1061, %v1062
    %v1068 = vsel %vm195, %v1056, %v1067
    %1072 = vst [vmem:[#allocation4 + $0x30] sm:$0xff] %v1064
    %1073 = vst [vmem:[#allocation4 + $0x38] sm:$0xff] %v1066
    %1074 = vst [vmem:[#allocation4 + $0x40] sm:$0xff] %v1068
    %v1075 = vld [vmem:[#allocation3] sm:$0xff]
    %v1076 = vld [vmem:[#allocation3 + $0x8] sm:$0xff]
    %v1077 = vld [vmem:[#allocation3 + $0x10] sm:$0xff]
    %v1078 = vld [vmem:[#allocation3 + $0x18] sm:$0xff]
    %v1079 = vld [vmem:[#allocation3 + $0x20] sm:$0xff]
    %v1080 = vld [vmem:[#allocation3 + $0x28] sm:$0xff]
    %v1081 = vld [vmem:[#allocation3 + $0x30] sm:$0xff]
    %v1082 = vpack.c.bf16 %v1075, %v1075
    %v1083 = vpack.c.bf16 %v1076, %v1076
    %v1084 = vpack.c.bf16 %v1077, %v1077
    %v1085 = vpack.c.bf16 %v1078, %v1078
    %v1086 = vpack.c.bf16 %v1079, %v1079
    %v1087 = vpack.c.bf16 %v1080, %v1080
    %v1088 = vpack.c.bf16 %v1081, %v1081
    %v1096 = vunpack.c.l.b16 %v1082
    %v1097 = vunpack.c.l.b16 %v1083
    %v1098 = vunpack.c.l.b16 %v1084
    %v1099 = vunpack.c.l.b16 %v1085
    %v1100 = vunpack.c.l.b16 %v1086
    %v1101 = vunpack.c.l.b16 %v1087
    %v1102 = vunpack.c.l.b16 %v1088
    %v1103 = vpack.c.b16 %v1097, %v1096
    %v1104 = vpack.c.b16 %v1099, %v1098
    %v1105 = vpack.c.b16 %v1101, %v1100
    %v1106 = vpack.c.b16 %v1102, %v1102
    %1107 = vrot.lane.b32.xlu0 %v1103, 110
    %v1108 = vpop.permute.xlu0 %1107
    %1109 = vrot.lane.b32.xlu0 %v1104, 110
    %v1110 = vpop.permute.xlu0 %1109
    %1111 = vrot.lane.b32.xlu0 %v1105, 110
    %v1112 = vpop.permute.xlu0 %1111
    %1113 = vrot.lane.b32.xlu0 %v1106, 110
    %v1114 = vpop.permute.xlu0 %1113
    %v1115 = vrot.slane %v1108, 4
    %v1116 = vrot.slane %v1110, 4
    %v1117 = vrot.slane %v1112, 4
    %v1118 = vrot.slane %v1114, 4
    %v1119 = vsel %vm130, %v1115, %v1116
    %v1120 = vsel %vm262, %v1108, %v1119
    %v1121 = vsel %vm130, %v1116, %v1117
    %v1122 = vsel %vm262, %v1110, %v1121
    %v1123 = vsel %vm130, %v1117, %v1118
    %v1124 = vsel %vm262, %v1112, %v1123
    %1128 = vst [vmem:[#allocation4 + $0x48] sm:$0xff] %v1120
    %1129 = vst [vmem:[#allocation4 + $0x50] sm:$0xff] %v1122
    %1130 = vst [vmem:[#allocation4 + $0x58] sm:$0xff] %v1124
    %v1131 = vld [vmem:[#allocation3] sm:$0xff]
    %v1132 = vld [vmem:[#allocation3 + $0x8] sm:$0xff]
    %v1133 = vld [vmem:[#allocation3 + $0x10] sm:$0xff]
    %v1134 = vld [vmem:[#allocation3 + $0x18] sm:$0xff]
    %v1135 = vld [vmem:[#allocation3 + $0x20] sm:$0xff]
    %v1136 = vld [vmem:[#allocation3 + $0x28] sm:$0xff]
    %v1137 = vld [vmem:[#allocation3 + $0x30] sm:$0xff]
    %v1138 = vpack.c.bf16 %v1131, %v1131
    %v1139 = vpack.c.bf16 %v1132, %v1132
    %v1140 = vpack.c.bf16 %v1133, %v1133
    %v1141 = vpack.c.bf16 %v1134, %v1134
    %v1142 = vpack.c.bf16 %v1135, %v1135
    %v1143 = vpack.c.bf16 %v1136, %v1136
    %v1144 = vpack.c.bf16 %v1137, %v1137
    %v1152 = vunpack.c.l.b16 %v1138
    %v1153 = vunpack.c.l.b16 %v1139
    %v1154 = vunpack.c.l.b16 %v1140
    %v1155 = vunpack.c.l.b16 %v1141
    %v1156 = vunpack.c.l.b16 %v1142
    %v1157 = vunpack.c.l.b16 %v1143
    %v1158 = vunpack.c.l.b16 %v1144
    %v1159 = vpack.c.b16 %v1153, %v1152
    %v1160 = vpack.c.b16 %v1155, %v1154
    %v1161 = vpack.c.b16 %v1157, %v1156
    %v1162 = vpack.c.b16 %v1158, %v1158
    %1163 = vrot.lane.b32.xlu0 %v1159, 109
    %v1164 = vpop.permute.xlu0 %1163
    %1165 = vrot.lane.b32.xlu0 %v1160, 109
    %v1166 = vpop.permute.xlu0 %1165
    %1167 = vrot.lane.b32.xlu0 %v1161, 109
    %v1168 = vpop.permute.xlu0 %1167
    %1169 = vrot.lane.b32.xlu0 %v1162, 109
    %v1170 = vpop.permute.xlu0 %1169
    %v1171 = vrot.slane %v1164, 4
    %v1172 = vrot.slane %v1166, 4
    %v1173 = vrot.slane %v1168, 4
    %v1174 = vrot.slane %v1170, 4
    %v1175 = vsel %vm130, %v1171, %v1172
    %v1176 = vsel %vm325, %v1164, %v1175
    %v1177 = vsel %vm130, %v1172, %v1173
    %v1178 = vsel %vm325, %v1166, %v1177
    %v1179 = vsel %vm130, %v1173, %v1174
    %v1180 = vsel %vm325, %v1168, %v1179
    %1184 = vst [vmem:[#allocation4 + $0x60] sm:$0xff] %v1176
    %1185 = vst [vmem:[#allocation4 + $0x68] sm:$0xff] %v1178
    %1186 = vst [vmem:[#allocation4 + $0x70] sm:$0xff] %v1180
    %v1187 = vld [vmem:[#allocation3] sm:$0xff]
    %v1188 = vld [vmem:[#allocation3 + $0x8] sm:$0xff]
    %v1189 = vld [vmem:[#allocation3 + $0x10] sm:$0xff]
    %v1190 = vld [vmem:[#allocation3 + $0x18] sm:$0xff]
    %v1191 = vld [vmem:[#allocation3 + $0x20] sm:$0xff]
    %v1192 = vld [vmem:[#allocation3 + $0x28] sm:$0xff]
    %v1193 = vld [vmem:[#allocation3 + $0x30] sm:$0xff]
    %v1194 = vpack.c.bf16 %v1187, %v1187
    %v1195 = vpack.c.bf16 %v1188, %v1188
    %v1196 = vpack.c.bf16 %v1189, %v1189
    %v1197 = vpack.c.bf16 %v1190, %v1190
    %v1198 = vpack.c.bf16 %v1191, %v1191
    %v1199 = vpack.c.bf16 %v1192, %v1192
    %v1200 = vpack.c.bf16 %v1193, %v1193
    %v1208 = vunpack.c.l.b16 %v1194
    %v1209 = vunpack.c.l.b16 %v1195
    %v1210 = vunpack.c.l.b16 %v1196
    %v1211 = vunpack.c.l.b16 %v1197
    %v1212 = vunpack.c.l.b16 %v1198
    %v1213 = vunpack.c.l.b16 %v1199
    %v1214 = vunpack.c.l.b16 %v1200
    %v1215 = vpack.c.b16 %v1209, %v1208
    %v1216 = vpack.c.b16 %v1211, %v1210
    %v1217 = vpack.c.b16 %v1213, %v1212
    %v1218 = vpack.c.b16 %v1214, %v1214
    %1219 = vrot.lane.b32.xlu0 %v1215, 108
    %v1220 = vpop.permute.xlu0 %1219
    %1221 = vrot.lane.b32.xlu0 %v1216, 108
    %v1222 = vpop.permute.xlu0 %1221
    %1223 = vrot.lane.b32.xlu0 %v1217, 108
    %v1224 = vpop.permute.xlu0 %1223
    %1225 = vrot.lane.b32.xlu0 %v1218, 108
    %v1226 = vpop.permute.xlu0 %1225
    %v1227 = vrot.slane %v1220, 4
    %v1228 = vrot.slane %v1222, 4
    %v1229 = vrot.slane %v1224, 4
    %v1230 = vrot.slane %v1226, 4
    %v1231 = vsel %vm130, %v1227, %v1228
    %v1232 = vsel %vm392, %v1220, %v1231
    %v1233 = vsel %vm130, %v1228, %v1229
    %v1234 = vsel %vm392, %v1222, %v1233
    %v1235 = vsel %vm130, %v1229, %v1230
    %v1236 = vsel %vm392, %v1224, %v1235
    %1240 = vst [vmem:[#allocation4 + $0x78] sm:$0xff] %v1232
    %1241 = vst [vmem:[#allocation4 + $0x80] sm:$0xff] %v1234
    %1242 = vst [vmem:[#allocation4 + $0x88] sm:$0xff] %v1236
    %v1243 = vld [vmem:[#allocation3] sm:$0xff]
    %v1244 = vld [vmem:[#allocation3 + $0x8] sm:$0xff]
    %v1245 = vld [vmem:[#allocation3 + $0x10] sm:$0xff]
    %v1246 = vld [vmem:[#allocation3 + $0x18] sm:$0xff]
    %v1247 = vld [vmem:[#allocation3 + $0x20] sm:$0xff]
    %v1248 = vld [vmem:[#allocation3 + $0x28] sm:$0xff]
    %v1249 = vld [vmem:[#allocation3 + $0x30] sm:$0xff]
    %v1250 = vpack.c.bf16 %v1243, %v1243
    %v1251 = vpack.c.bf16 %v1244, %v1244
    %v1252 = vpack.c.bf16 %v1245, %v1245
    %v1253 = vpack.c.bf16 %v1246, %v1246
    %v1254 = vpack.c.bf16 %v1247, %v1247
    %v1255 = vpack.c.bf16 %v1248, %v1248
    %v1256 = vpack.c.bf16 %v1249, %v1249
    %v1264 = vunpack.c.l.b16 %v1250
    %v1265 = vunpack.c.l.b16 %v1251
    %v1266 = vunpack.c.l.b16 %v1252
    %v1267 = vunpack.c.l.b16 %v1253
    %v1268 = vunpack.c.l.b16 %v1254
    %v1269 = vunpack.c.l.b16 %v1255
    %v1270 = vunpack.c.l.b16 %v1256
    %v1271 = vpack.c.b16 %v1265, %v1264
    %v1272 = vpack.c.b16 %v1267, %v1266
    %v1273 = vpack.c.b16 %v1269, %v1268
    %v1274 = vpack.c.b16 %v1270, %v1270
    %1275 = vrot.lane.b32.xlu0 %v1271, 92
    %v1276 = vpop.permute.xlu0 %1275
    %1277 = vrot.lane.b32.xlu0 %v1272, 92
    %v1278 = vpop.permute.xlu0 %1277
    %1279 = vrot.lane.b32.xlu0 %v1273, 92
    %v1280 = vpop.permute.xlu0 %1279
    %1281 = vrot.lane.b32.xlu0 %v1274, 92
    %v1282 = vpop.permute.xlu0 %1281
    %v1283 = vrot.slane %v1276, 4
    %v1284 = vrot.slane %v1278, 4
    %v1285 = vrot.slane %v1280, 4
    %v1286 = vrot.slane %v1282, 4
    %v1287 = vsel %vm130, %v1283, %v1284
    %v1288 = vsel %vm455, %v1276, %v1287
    %v1289 = vsel %vm130, %v1284, %v1285
    %v1290 = vsel %vm455, %v1278, %v1289
    %v1291 = vsel %vm130, %v1285, %v1286
    %v1292 = vsel %vm455, %v1280, %v1291
    %1296 = vst [vmem:[#allocation4 + $0x90] sm:$0xff] %v1288
    %1297 = vst [vmem:[#allocation4 + $0x98] sm:$0xff] %v1290
    %1298 = vst [vmem:[#allocation4 + $0xa0] sm:$0xff] %v1292
    %v1299 = vld [vmem:[#allocation3] sm:$0xff]
    %v1300 = vld [vmem:[#allocation3 + $0x8] sm:$0xff]
    %v1301 = vld [vmem:[#allocation3 + $0x10] sm:$0xff]
    %v1302 = vld [vmem:[#allocation3 + $0x18] sm:$0xff]
    %v1303 = vld [vmem:[#allocation3 + $0x20] sm:$0xff]
    %v1304 = vld [vmem:[#allocation3 + $0x28] sm:$0xff]
    %v1305 = vld [vmem:[#allocation3 + $0x30] sm:$0xff]
    %v1306 = vpack.c.bf16 %v1299, %v1299
    %v1307 = vpack.c.bf16 %v1300, %v1300
    %v1308 = vpack.c.bf16 %v1301, %v1301
    %v1309 = vpack.c.bf16 %v1302, %v1302
    %v1310 = vpack.c.bf16 %v1303, %v1303
    %v1311 = vpack.c.bf16 %v1304, %v1304
    %v1312 = vpack.c.bf16 %v1305, %v1305
    %v1320 = vunpack.c.l.b16 %v1306
    %v1321 = vunpack.c.l.b16 %v1307
    %v1322 = vunpack.c.l.b16 %v1308
    %v1323 = vunpack.c.l.b16 %v1309
    %v1324 = vunpack.c.l.b16 %v1310
    %v1325 = vunpack.c.l.b16 %v1311
    %v1326 = vunpack.c.l.b16 %v1312
    %v1327 = vpack.c.b16 %v1321, %v1320
    %v1328 = vpack.c.b16 %v1323, %v1322
    %v1329 = vpack.c.b16 %v1325, %v1324
    %v1330 = vpack.c.b16 %v1326, %v1326
    %1331 = vrot.lane.b32.xlu0 %v1327, 91
    %v1332 = vpop.permute.xlu0 %1331
    %1333 = vrot.lane.b32.xlu0 %v1328, 91
    %v1334 = vpop.permute.xlu0 %1333
    %1335 = vrot.lane.b32.xlu0 %v1329, 91
    %v1336 = vpop.permute.xlu0 %1335
    %1337 = vrot.lane.b32.xlu0 %v1330, 91
    %v1338 = vpop.permute.xlu0 %1337
    %v1339 = vrot.slane %v1332, 4
    %v1340 = vrot.slane %v1334, 4
    %v1341 = vrot.slane %v1336, 4
    %v1342 = vrot.slane %v1338, 4
    %v1343 = vsel %vm130, %v1339, %v1340
    %v1344 = vsel %vm522, %v1332, %v1343
    %v1345 = vsel %vm130, %v1340, %v1341
    %v1346 = vsel %vm522, %v1334, %v1345
    %v1347 = vsel %vm130, %v1341, %v1342
    %v1348 = vsel %vm522, %v1336, %v1347
    %1352 = vst [vmem:[#allocation4 + $0xa8] sm:$0xff] %v1344
    %1353 = vst [vmem:[#allocation4 + $0xb0] sm:$0xff] %v1346
    %1354 = vst [vmem:[#allocation4 + $0xb8] sm:$0xff] %v1348
    %v1355 = vld [vmem:[#allocation3] sm:$0xff]
    %v1356 = vld [vmem:[#allocation3 + $0x8] sm:$0xff]
    %v1357 = vld [vmem:[#allocation3 + $0x10] sm:$0xff]
    %v1358 = vld [vmem:[#allocation3 + $0x18] sm:$0xff]
    %v1359 = vld [vmem:[#allocation3 + $0x20] sm:$0xff]
    %v1360 = vld [vmem:[#allocation3 + $0x28] sm:$0xff]
    %v1361 = vld [vmem:[#allocation3 + $0x30] sm:$0xff]
    %v1362 = vpack.c.bf16 %v1355, %v1355
    %v1363 = vpack.c.bf16 %v1356, %v1356
    %v1364 = vpack.c.bf16 %v1357, %v1357
    %v1365 = vpack.c.bf16 %v1358, %v1358
    %v1366 = vpack.c.bf16 %v1359, %v1359
    %v1367 = vpack.c.bf16 %v1360, %v1360
    %v1368 = vpack.c.bf16 %v1361, %v1361
    %v1376 = vunpack.c.l.b16 %v1362
    %v1377 = vunpack.c.l.b16 %v1363
    %v1378 = vunpack.c.l.b16 %v1364
    %v1379 = vunpack.c.l.b16 %v1365
    %v1380 = vunpack.c.l.b16 %v1366
    %v1381 = vunpack.c.l.b16 %v1367
    %v1382 = vunpack.c.l.b16 %v1368
    %v1383 = vpack.c.b16 %v1377, %v1376
    %v1384 = vpack.c.b16 %v1379, %v1378
    %v1385 = vpack.c.b16 %v1381, %v1380
    %v1386 = vpack.c.b16 %v1382, %v1382
    %1387 = vrot.lane.b32.xlu0 %v1383, 90
    %v1388 = vpop.permute.xlu0 %1387
    %1389 = vrot.lane.b32.xlu0 %v1384, 90
    %v1390 = vpop.permute.xlu0 %1389
    %1391 = vrot.lane.b32.xlu0 %v1385, 90
    %v1392 = vpop.permute.xlu0 %1391
    %1393 = vrot.lane.b32.xlu0 %v1386, 90
    %v1394 = vpop.permute.xlu0 %1393
    %v1395 = vrot.slane %v1388, 4
    %v1396 = vrot.slane %v1390, 4
    %v1397 = vrot.slane %v1392, 4
    %v1398 = vrot.slane %v1394, 4
    %v1399 = vsel %vm130, %v1395, %v1396
    %v1400 = vsel %vm585, %v1388, %v1399
    %v1401 = vsel %vm130, %v1396, %v1397
    %v1402 = vsel %vm585, %v1390, %v1401
    %v1403 = vsel %vm130, %v1397, %v1398
    %v1404 = vsel %vm585, %v1392, %v1403
    %1408 = vst [vmem:[#allocation4 + $0xc0] sm:$0xff] %v1400
    %1409 = vst [vmem:[#allocation4 + $0xc8] sm:$0xff] %v1402
    %1410 = vst [vmem:[#allocation4 + $0xd0] sm:$0xff] %v1404
    %v1411 = vld [vmem:[%s3] sm:$0xf]
    %v1412 = vld [vmem:[#allocation4] sm:$0xff]
    %v1413 = vld [vmem:[#allocation4 + $0x8] sm:$0xff]
    %v1414 = vld [vmem:[#allocation4 + $0x10] sm:$0xff]
    %v1415 = vld [vmem:[#allocation4 + $0x18] sm:$0xff]
    %v1416 = vld [vmem:[#allocation4 + $0x20] sm:$0xff]
    %v1417 = vld [vmem:[#allocation4 + $0x28] sm:$0xff]
    %v1418 = vld [vmem:[#allocation4 + $0x30] sm:$0xff]
    %v1419 = vld [vmem:[#allocation4 + $0x38] sm:$0xff]
    %v1420 = vld [vmem:[#allocation4 + $0x40] sm:$0xff]
    %v1421 = vld [vmem:[#allocation4 + $0x48] sm:$0xff]
    %v1422 = vld [vmem:[#allocation4 + $0x50] sm:$0xff]
    %v1423 = vld [vmem:[#allocation4 + $0x58] sm:$0xff]
    %v1424 = vld [vmem:[#allocation4 + $0x60] sm:$0xff]
    %v1425 = vld [vmem:[#allocation4 + $0x68] sm:$0xff]
    %v1426 = vld [vmem:[#allocation4 + $0x70] sm:$0xff]
    %v1427 = vld [vmem:[#allocation4 + $0x78] sm:$0xff]
    %v1428 = vld [vmem:[#allocation4 + $0x80] sm:$0xff]
    %v1429 = vld [vmem:[#allocation4 + $0x88] sm:$0xff]
    %v1430 = vld [vmem:[#allocation4 + $0x90] sm:$0xff]
    %v1431 = vld [vmem:[#allocation4 + $0x98] sm:$0xff]
    %v1432 = vld [vmem:[#allocation4 + $0xa0] sm:$0xff]
    %v1433 = vld [vmem:[#allocation4 + $0xa8] sm:$0xff]
    %v1434 = vld [vmem:[#allocation4 + $0xb0] sm:$0xff]
    %v1435 = vld [vmem:[#allocation4 + $0xb8] sm:$0xff]
    %v1436 = vld [vmem:[#allocation4 + $0xc0] sm:$0xff]
    %v1437 = vld [vmem:[#allocation4 + $0xc8] sm:$0xff]
    %v1438 = vld [vmem:[#allocation4 + $0xd0] sm:$0xff]
    %v1439 = vld [vmem:[%s4] sm:$0xff]
    %1441 = vset.pattern.permute.xlu0 0
    %1442 = vperm.xlu0 %1441, %v1439
    %v1443 = vpop.permute.xlu0 %1442
    %v1472 = vunpack.c.l.b16 %v1412
    %v1473 = vunpack.c.h.b16 %v1412
    %v1474 = vunpack.c.l.b16 %v1413
    %v1475 = vunpack.c.h.b16 %v1413
    %v1476 = vunpack.c.l.b16 %v1414
    %v1477 = vunpack.c.h.b16 %v1414
    %v1478 = vunpack.c.l.b16 %v1415
    %v1479 = vunpack.c.h.b16 %v1415
    %v1480 = vunpack.c.l.b16 %v1416
    %v1481 = vunpack.c.h.b16 %v1416
    %v1482 = vunpack.c.l.b16 %v1417
    %v1483 = vunpack.c.h.b16 %v1417
    %v1484 = vunpack.c.l.b16 %v1418
    %v1485 = vunpack.c.h.b16 %v1418
    %v1486 = vunpack.c.l.b16 %v1419
    %v1487 = vunpack.c.h.b16 %v1419
    %v1488 = vunpack.c.l.b16 %v1420
    %v1489 = vunpack.c.h.b16 %v1420
    %v1490 = vunpack.c.l.b16 %v1421
    %v1491 = vunpack.c.h.b16 %v1421
    %v1492 = vunpack.c.l.b16 %v1422
    %v1493 = vunpack.c.h.b16 %v1422
    %v1494 = vunpack.c.l.b16 %v1423
    %v1495 = vunpack.c.h.b16 %v1423
    %v1496 = vunpack.c.l.b16 %v1424
    %v1497 = vunpack.c.h.b16 %v1424
    %v1498 = vunpack.c.l.b16 %v1425
    %v1499 = vunpack.c.h.b16 %v1425
    %v1500 = vunpack.c.l.b16 %v1426
    %v1501 = vunpack.c.h.b16 %v1426
    %v1502 = vunpack.c.l.b16 %v1427
    %v1503 = vunpack.c.h.b16 %v1427
    %v1504 = vunpack.c.l.b16 %v1428
    %v1505 = vunpack.c.h.b16 %v1428
    %v1506 = vunpack.c.l.b16 %v1429
    %v1507 = vunpack.c.h.b16 %v1429
    %v1508 = vunpack.c.l.b16 %v1430
    %v1509 = vunpack.c.h.b16 %v1430
    %v1510 = vunpack.c.l.b16 %v1431
    %v1511 = vunpack.c.h.b16 %v1431
    %v1512 = vunpack.c.l.b16 %v1432
    %v1513 = vunpack.c.h.b16 %v1432
    %v1514 = vunpack.c.l.b16 %v1433
    %v1515 = vunpack.c.h.b16 %v1433
    %v1516 = vunpack.c.l.b16 %v1434
    %v1517 = vunpack.c.h.b16 %v1434
    %v1518 = vunpack.c.l.b16 %v1435
    %v1519 = vunpack.c.h.b16 %v1435
    %v1520 = vunpack.c.l.b16 %v1436
    %v1521 = vunpack.c.h.b16 %v1436
    %v1522 = vunpack.c.l.b16 %v1437
    %v1523 = vunpack.c.h.b16 %v1437
    %v1524 = vunpack.c.l.b16 %v1438
    %v1525 = vunpack.c.h.b16 %v1438
    %v1526 = vpack.c.b16 %v1478, %v1472
    %v1527 = vpack.c.b16 %v1479, %v1473
    %v1528 = vpack.c.b16 %v1480, %v1474
    %v1529 = vpack.c.b16 %v1481, %v1475
    %v1530 = vpack.c.b16 %v1482, %v1476
    %v1531 = vpack.c.b16 %v1483, %v1477
    %v1532 = vpack.c.b16 %v1490, %v1484
    %v1533 = vpack.c.b16 %v1491, %v1485
    %v1534 = vpack.c.b16 %v1492, %v1486
    %v1535 = vpack.c.b16 %v1493, %v1487
    %v1536 = vpack.c.b16 %v1494, %v1488
    %v1537 = vpack.c.b16 %v1495, %v1489
    %v1538 = vpack.c.b16 %v1502, %v1496
    %v1539 = vpack.c.b16 %v1503, %v1497
    %v1540 = vpack.c.b16 %v1504, %v1498
    %v1541 = vpack.c.b16 %v1505, %v1499
    %v1542 = vpack.c.b16 %v1506, %v1500
    %v1543 = vpack.c.b16 %v1507, %v1501
    %v1544 = vpack.c.b16 %v1514, %v1508
    %v1545 = vpack.c.b16 %v1515, %v1509
    %v1546 = vpack.c.b16 %v1516, %v1510
    %v1547 = vpack.c.b16 %v1517, %v1511
    %v1548 = vpack.c.b16 %v1518, %v1512
    %v1549 = vpack.c.b16 %v1519, %v1513
    %v1550 = vpack.c.b16 %v1520, %v1520
    %v1551 = vpack.c.b16 %v1521, %v1521
    %v1552 = vpack.c.b16 %v1522, %v1522
    %v1553 = vpack.c.b16 %v1523, %v1523
    %v1554 = vpack.c.b16 %v1524, %v1524
    %v1555 = vpack.c.b16 %v1525, %v1525
    %vm1580 = vcmask 588800
    %v1582 = vsel %vm1580, %v1411, 0
    %vm1584 = vcmask 1043456
    %v1586 = vsel %vm1584, %v1550, 0
    %v1589 = vsel %vm1584, %v1551, 0
    %v1592 = vsel %vm1584, %v1552, 0
    %v1595 = vsel %vm1584, %v1553, 0
    %v1598 = vsel %vm1584, %v1554, 0
    %v1601 = vsel %vm1584, %v1555, 0
    %1603 = vmatprep.subr.bf16.mxu0 %v1527
    %1604 = vmatpush1.bf16.msra.mxu0 %v1526
    %1605 = vmatprep.subr.bf16.mxu0 %v1533
    %1606 = vmatpush1.bf16.msra.mxu0 %v1532
    %1607 = vmatprep.subr.bf16.mxu0 %v1539
    %1608 = vmatpush1.bf16.msra.mxu0 %v1538
    %1609 = vmatprep.subr.bf16.mxu0 %v1545
    %1610 = vmatpush1.bf16.msra.mxu0 %v1544
    %1611 = vmatprep.subr.bf16.mxu0 %v1589
    %1612 = vmatpush1.bf16.msra.mxu0 %v1586
    %1613 = vmatprep.subr.bf16.mxu0 0
    %1614 = vmatpush1.bf16.msra.mxu0 0
    %1615 = vmatprep.subr.bf16.mxu0 0
    %1616 = vmatpush1.bf16.msra.mxu0 0
    %1617 = vmatprep.subr.bf16.mxu0 0
    %1618 = vmatpush1.bf16.msra.mxu0 0
    %1619 = vmatprep.subr.bf16.mxu0 0
    %1620 = vmatpush1.bf16.msra.mxu0 0
    %1621 = vmatprep.subr.bf16.mxu0 0
    %1622 = vmatpush1.bf16.msra.mxu0 0
    %1623 = vmatprep.subr.bf16.mxu0 0
    %1624 = vmatpush1.bf16.msra.mxu0 0
    %1625 = vmatprep.subr.bf16.mxu0 0
    %1626 = vmatpush1.bf16.msra.mxu0 0
    %1627 = vmatprep.subr.bf16.mxu0 0
    %1628 = vmatpush1.bf16.msra.mxu0 0
    %1629 = vmatprep.subr.bf16.mxu0 0
    %1630 = vmatpush1.bf16.msra.mxu0 0
    %1631 = vmatprep.subr.bf16.mxu0 0
    %1632 = vmatpush1.bf16.msra.mxu0 0
    %1633 = vmatprep.subr.bf16.mxu0 0
    %1634 = vmatpush1.bf16.msra.mxu0 0
    %1635 = vmatprep.mubr.bf16.mxu0 0
    %1636 = vmatmul.mubr.bf16.gmra.mrb[0].mxu0 %v1582
    %v1637 = vpop.f32.mrb[0].mxu0
    %v1638 = vadd.f32 %v1443, %v1637
    %v1639 = vpop.f32.mrb[0].mxu0
    %v1640 = vadd.f32 %v1443, %v1639
    %v1641 = vpop.f32.mrb[0].mxu0
    %v1642 = vpop.f32.mrb[0].mxu0
    %1643 = vdwg.mxu0
    %1644 = vmatprep.subr.bf16.mxu0 %v1529
    %1645 = vmatpush1.bf16.msra.mxu0 %v1528
    %1646 = vmatprep.subr.bf16.mxu0 %v1535
    %1647 = vmatpush1.bf16.msra.mxu0 %v1534
    %1648 = vmatprep.subr.bf16.mxu0 %v1541
    %1649 = vmatpush1.bf16.msra.mxu0 %v1540
    %1650 = vmatprep.subr.bf16.mxu0 %v1547
    %1651 = vmatpush1.bf16.msra.mxu0 %v1546
    %1652 = vmatprep.subr.bf16.mxu0 %v1595
    %1653 = vmatpush1.bf16.msra.mxu0 %v1592
    %1654 = vmatprep.subr.bf16.mxu0 0
    %1655 = vmatpush1.bf16.msra.mxu0 0
    %1656 = vmatprep.subr.bf16.mxu0 0
    %1657 = vmatpush1.bf16.msra.mxu0 0
    %1658 = vmatprep.subr.bf16.mxu0 0
    %1659 = vmatpush1.bf16.msra.mxu0 0
    %1660 = vmatprep.subr.bf16.mxu0 0
    %1661 = vmatpush1.bf16.msra.mxu0 0
    %1662 = vmatprep.subr.bf16.mxu0 0
    %1663 = vmatpush1.bf16.msra.mxu0 0
    %1664 = vmatprep.subr.bf16.mxu0 0
    %1665 = vmatpush1.bf16.msra.mxu0 0
    %1666 = vmatprep.subr.bf16.mxu0 0
    %1667 = vmatpush1.bf16.msra.mxu0 0
    %1668 = vmatprep.subr.bf16.mxu0 0
    %1669 = vmatpush1.bf16.msra.mxu0 0
    %1670 = vmatprep.subr.bf16.mxu0 0
    %1671 = vmatpush1.bf16.msra.mxu0 0
    %1672 = vmatprep.subr.bf16.mxu0 0
    %1673 = vmatpush1.bf16.msra.mxu0 0
    %1674 = vmatprep.subr.bf16.mxu0 0
    %1675 = vmatpush1.bf16.msra.mxu0 0
    %1676 = vmatprep.mubr.bf16.mxu0 0
    %1677 = vmatmul.mubr.bf16.gmra.mrb[0].mxu0 %v1582
    %v1678 = vpop.f32.mrb[0].mxu0
    %v1679 = vadd.f32 %v1443, %v1678
    %v1680 = vpop.f32.mrb[0].mxu0
    %v1681 = vadd.f32 %v1443, %v1680
    %v1682 = vpop.f32.mrb[0].mxu0
    %v1683 = vpop.f32.mrb[0].mxu0
    %1684 = vdwg.mxu0
    %1685 = vmatprep.subr.bf16.mxu0 %v1531
    %1686 = vmatpush1.bf16.msra.mxu0 %v1530
    %1687 = vmatprep.subr.bf16.mxu0 %v1537
    %1688 = vmatpush1.bf16.msra.mxu0 %v1536
    %1689 = vmatprep.subr.bf16.mxu0 %v1543
    %1690 = vmatpush1.bf16.msra.mxu0 %v1542
    %1691 = vmatprep.subr.bf16.mxu0 %v1549
    %1692 = vmatpush1.bf16.msra.mxu0 %v1548
    %1693 = vmatprep.subr.bf16.mxu0 %v1601
    %1694 = vmatpush1.bf16.msra.mxu0 %v1598
    %1695 = vmatprep.subr.bf16.mxu0 0
    %1696 = vmatpush1.bf16.msra.mxu0 0
    %1697 = vmatprep.subr.bf16.mxu0 0
    %1698 = vmatpush1.bf16.msra.mxu0 0
    %1699 = vmatprep.subr.bf16.mxu0 0
    %1700 = vmatpush1.bf16.msra.mxu0 0
    %1701 = vmatprep.subr.bf16.mxu0 0
    %1702 = vmatpush1.bf16.msra.mxu0 0
    %1703 = vmatprep.subr.bf16.mxu0 0
    %1704 = vmatpush1.bf16.msra.mxu0 0
    %1705 = vmatprep.subr.bf16.mxu0 0
    %1706 = vmatpush1.bf16.msra.mxu0 0
    %1707 = vmatprep.subr.bf16.mxu0 0
    %1708 = vmatpush1.bf16.msra.mxu0 0
    %1709 = vmatprep.subr.bf16.mxu0 0
    %1710 = vmatpush1.bf16.msra.mxu0 0
    %1711 = vmatprep.subr.bf16.mxu0 0
    %1712 = vmatpush1.bf16.msra.mxu0 0
    %1713 = vmatprep.subr.bf16.mxu0 0
    %1714 = vmatpush1.bf16.msra.mxu0 0
    %1715 = vmatprep.subr.bf16.mxu0 0
    %1716 = vmatpush1.bf16.msra.mxu0 0
    %1717 = vmatprep.mubr.bf16.mxu0 0
    %1718 = vmatmul.mubr.bf16.gmra.mrb[0].mxu0 %v1582
    %v1719 = vpop.f32.mrb[0].mxu0
    %v1720 = vadd.f32 %v1443, %v1719
    %v1721 = vpop.f32.mrb[0].mxu0
    %v1722 = vadd.f32 %v1443, %v1721
    %v1723 = vpop.f32.mrb[0].mxu0
    %v1724 = vpop.f32.mrb[0].mxu0
    %1725 = vdwg.mxu0
    %v1726 = vxor.u32 %v1638, 2147483648
    %v1727 = vxor.u32 %v1640, 2147483648
    %v1728 = vxor.u32 %v1679, 2147483648
    %v1729 = vxor.u32 %v1681, 2147483648
    %v1730 = vxor.u32 %v1720, 2147483648
    %v1731 = vxor.u32 %v1722, 2147483648
    %v1732 = vmul.f32 %v1726, 1.442695
    %v1733 = vpow.pop %v1732
    %v1734 = vmul.f32 %v1727, 1.442695
    %v1735 = vpow.pop %v1734
    %v1736 = vmul.f32 %v1728, 1.442695
    %v1737 = vpow.pop %v1736
    %v1738 = vmul.f32 %v1729, 1.442695
    %v1739 = vpow.pop %v1738
    %v1740 = vmul.f32 %v1730, 1.442695
    %v1741 = vpow.pop %v1740
    %v1742 = vmul.f32 %v1731, 1.442695
    %v1743 = vpow.pop %v1742
    %v1744 = vadd.f32 %v1733, 1.0
    %v1745 = vadd.f32 %v1735, 1.0
    %v1746 = vadd.f32 %v1737, 1.0
    %v1747 = vadd.f32 %v1739, 1.0
    %v1748 = vadd.f32 %v1741, 1.0
    %v1749 = vadd.f32 %v1743, 1.0
    %v1750 = vrcp.pop %v1744
    %v1751 = vmul.f32 1.0, %v1750
    %v1752 = vrcp.pop %v1745
    %v1753 = vmul.f32 1.0, %v1752
    %v1754 = vrcp.pop %v1746
    %v1755 = vmul.f32 1.0, %v1754
    %v1756 = vrcp.pop %v1747
    %v1757 = vmul.f32 1.0, %v1756
    %v1758 = vrcp.pop %v1748
    %v1759 = vmul.f32 1.0, %v1758
    %v1760 = vrcp.pop %v1749
    %v1761 = vmul.f32 1.0, %v1760
    %1762 = vst [vmem:[#allocation8] sm:$0xff] %v1751
    %1763 = vst [vmem:[#allocation8 + $0x8] sm:$0xff] %v1753
    %1764 = vst [vmem:[#allocation8 + $0x10] sm:$0xff] %v1755
    %1765 = vst [vmem:[#allocation8 + $0x18] sm:$0xff] %v1757
    %1766 = vst [vmem:[#allocation8 + $0x20] sm:$0xff] %v1759
    %1767 = vst [vmem:[#allocation8 + $0x28] sm:$0xff] %v1761
    // Predicated region
    $region30: #{tpu_custom_call.1} parent=1 // pred_check
      _
    $region31: #{tpu_custom_call.1} parent=1 // pred_check_branch
      %1769 = sbr.rel (0) target = $region33
    $region32: #{tpu_custom_call.1} parent=1 // pred_region
      %s1771 = ssub.s32 768, 768
      %1772 = vsyncadd [#allocation7], %s1771
      %s1774 = sshll.u32 [#allocation8], 4
      %s1775 = int_to_ptr.vmem [resolvable:$true] %s1774
      %1777 = dma.vmem_to_hbm [thread:$0]  %s1775, 768, %s6, [#allocation7]
    $region33: #{tpu_custom_call.1} parent=1 // pred_fallthru
      _
    // Predicated region
    $region34: #{tpu_custom_call.1} parent=1 // pred_check
      _
    $region35: #{tpu_custom_call.1} parent=1 // pred_check_branch
      %1779 = sbr.rel (0) target = $region37
    $region36: #{tpu_custom_call.1} parent=1 // pred_region
      %1780 = dma.done [#allocation7], 768
    $region37: #{tpu_custom_call.1} parent=1 // pred_fallthru
      _
    %1781 = vsyncpa [#allocation6], 1
    %1782 = vsyncpa [#allocation7], 1

</llo_original>
